<compile_context>
chip_gen: v6e
topology: v6e:2x2x1
jax: 0.10.0
libtpu: 0.0.40
codegen_flags: <defaults>
</compile_context>

<pallas_src>
import functools

import jax
import jax.numpy as jnp
from jax import lax
from jax.experimental import pallas as pl
from jax.experimental.pallas import tpu as pltpu

EPS = 1e-5          # nn.InstanceNorm2d default (affine=False, biased variance)
_LANE = 128         # lane-aligned left/right halo margin of the flat image


def _residual_block_kernel(x_ref, w1_ref, w2_ref, out_ref, scr_ref,
                           *, B, C, H, W, PAD):
    """Fused conv1 + IN + ReLU + conv2 + IN + residual for B batch elements.

    x_ref  : (B, C, H*W)          input, lane-dense
    w*_ref : (9, C, C)            tap-major conv weights w[t, cout, cin]
    out_ref: (B, C, H*W)          output, lane-dense
    scr_ref: (B, C, 2*PAD + H*W)  flat zero-haloed images (VMEM scratch)
    """
    HW = H * W

    # Column-validity masks for the dw = -1 / +1 taps.  Built once per grid
    # step and reused for all B elements and both convolutions.
    lane = lax.broadcasted_iota(jnp.int32, (C, HW), 1)
    col = (lane & (W - 1)) if (W & (W - 1)) == 0 else (lane % W)
    left_ok = col > 0            # source column valid for dw = -1
    right_ok = col < (W - 1)     # source column valid for dw = +1

    # Zero only the halo margins; the centre rows are fully overwritten below.
    # Done every grid step on purpose: with "parallel" batch semantics each
    # TensorCore has a private scratch, so hoisting behind program_id()==0
    # would leave the second core's margins uninitialised.
    scr_ref[:, :, 0:PAD] = jnp.zeros((B, C, PAD), jnp.float32)
    scr_ref[:, :, PAD + HW:] = jnp.zeros((B, C, PAD), jnp.float32)

    def conv(b, w_ref):
        # 3x3 conv as 9 per-tap (C, C) @ (C, HW) MXU matmuls accumulated in a
        # register-resident f32 accumulator (no materialised im2col matrix).
        acc = jnp.zeros((C, HW), jnp.float32)
        for kh in range(3):
            for kw in range(3):
                dh, dw = kh - 1, kw - 1
                s = dh * W + dw
                win = scr_ref[b, :, PAD + s: PAD + s + HW]
                if dw == -1:
                    win = jnp.where(left_ok, win, 0.0)
                elif dw == 1:
                    win = jnp.where(right_ok, win, 0.0)
                acc = acc + jnp.dot(w_ref[kh * 3 + kw], win,
                                    preferred_element_type=jnp.float32)
        return acc

    def instance_norm(y):
        # Two-pass variance (numerically safe) + EUP rsqrt.
        inv = 1.0 / HW
        mean = jnp.sum(y, axis=-1, keepdims=True) * inv
        d = y - mean
        var = jnp.sum(d * d, axis=-1, keepdims=True) * inv
        return d * lax.rsqrt(var + EPS)

    for b in range(B):                                        # static unroll
        xb = x_ref[b].astype(jnp.float32)                     # reused for residual
        scr_ref[b, :, PAD:PAD + HW] = xb
        y = jnp.maximum(instance_norm(conv(b, w1_ref)), 0.0)  # conv1 + IN1 + ReLU
        scr_ref[b, :, PAD:PAD + HW] = y                       # halo stays zero
        y = instance_norm(conv(b, w2_ref))                    # conv2 + IN2
        out_ref[b] = (y + xb).astype(out_ref.dtype)           # residual add


def residual_block(x_nchw, w1_oihw, w2_oihw, *, groups=None):
    """Pallas implementation of ResidualBlock.forward (stride=1, Cin==Cout)."""
    N, C, H, W = x_nchw.shape
    assert w1_oihw.shape == (C, C, 3, 3) and w2_oihw.shape == (C, C, 3, 3), (
        "kernel assumes in_channels == out_channels, 3x3 kernels, stride 1")
    HW = H * W
    PAD = ((W + 1 + _LANE - 1) // _LANE) * _LANE    # halo margin >= W+1, lane aligned
    SCRW = 2 * PAD + HW

    # Batch folding: amortise the ~0.35us/step pipeline overhead while keeping
    # >= 2 grid steps when possible so both v7x TensorCores get work (extra
    # step is a no-op cost on single-TC v5e/v6e).
    if groups is None:
        groups = 2 if (N >= 2 and N % 2 == 0) else 1
    assert N % groups == 0
    B = N // groups

    def prep_w(w):
        # torch (Cout, Cin, 3, 3) -> (9, Cout, Cin), tap-major
        return jnp.transpose(w, (2, 3, 0, 1)).reshape(9, C, C).astype(jnp.float32)

    w1 = prep_w(w1_oihw)
    w2 = prep_w(w2_oihw)
    x_flat = x_nchw.reshape(N, C, HW)               # lane-dense, free reshape

    kernel = functools.partial(_residual_block_kernel,
                               B=B, C=C, H=H, W=W, PAD=PAD)

    out_flat = pl.pallas_call(
        kernel,
        out_shape=jax.ShapeDtypeStruct((N, C, HW), x_nchw.dtype),
        grid_spec=pltpu.PrefetchScalarGridSpec(
            num_scalar_prefetch=0,
            grid=(groups,),
            in_specs=[
                pl.BlockSpec((B, C, HW), lambda g: (g, 0, 0)),
                pl.BlockSpec((9, C, C), lambda g: (0, 0, 0)),
                pl.BlockSpec((9, C, C), lambda g: (0, 0, 0)),
            ],
            out_specs=pl.BlockSpec((B, C, HW), lambda g: (g, 0, 0)),
            scratch_shapes=[
                pltpu.VMEM((B, C, SCRW), jnp.float32),   # flat zero-haloed images
            ],
        ),
        compiler_params=pltpu.CompilerParams(
            dimension_semantics=("parallel",),           # shard steps over v7x's 2 TCs
        ),
    )(x_flat, w1, w2)

    return out_flat.reshape(N, C, H, W)


def ref_forward(x, w1, w2):
    """Pure-JAX reference matching the PyTorch module (NCHW)."""
    def conv(inp, w):
        return lax.conv_general_dilated(
            inp, w, window_strides=(1, 1), padding=((1, 1), (1, 1)),
            dimension_numbers=("NCHW", "OIHW", "NCHW"),
            precision=lax.Precision.HIGHEST)

    def inorm(v):
        mean = v.mean(axis=(2, 3), keepdims=True)
        var = ((v - mean) ** 2).mean(axis=(2, 3), keepdims=True)   # biased
        return (v - mean) / jnp.sqrt(var + EPS)

    out = jnp.maximum(inorm(conv(x, w1)), 0.0)
    out = inorm(conv(out, w2))
    return out + x


if __name__ == "__main__":
    N, C, H, W = 2, 4, 16, 16     # in_channels == out_channels == 4, stride == 1
    key = jax.random.PRNGKey(0)
    kx, k1, k2 = jax.random.split(key, 3)
    x = jax.random.normal(kx, (N, C, H, W), jnp.float32)
    w1 = jax.random.normal(k1, (C, C, 3, 3), jnp.float32) * 0.1   # conv1.weight
    w2 = jax.random.normal(k2, (C, C, 3, 3), jnp.float32) * 0.1   # conv2.weight

    out = jax.block_until_ready(residual_block(x, w1, w2))
    ref = ref_forward(x, w1, w2)
    err = float(jnp.max(jnp.abs(out - ref)))
    assert out.shape == (N, C, H, W) and out.dtype == jnp.float32
    assert err < 5e-4, f"max abs err {err}"
    print("KERNEL_OK")
</pallas_src>

<mosaic_0001>
module attributes {stable_mosaic.version = 11 : i64} {
  func.func @_residual_block_kernel(%arg0: i32, %arg1: memref<1x4x256xf32, #tpu.memory_space<vmem>>, %arg2: memref<9x4x4xf32, #tpu.memory_space<vmem>>, %arg3: memref<9x4x4xf32, #tpu.memory_space<vmem>>, %arg4: memref<1x4x256xf32, #tpu.memory_space<vmem>>, %arg5: memref<1x4x512xf32, #tpu.memory_space<vmem>>) attributes {dimension_semantics = [#tpu.dimension_semantics<parallel>], iteration_bounds = array<i64: 2>, scalar_prefetch = 0 : i64, scratch_operands = 1 : i64, tpu.core_type = #tpu.core_type<tc>, window_params = [{transform_indices = @transform_0, window_bounds = array<i64: 1, 4, 256>}, {pipeline_mode = #tpu.pipeline_mode<synchronous>, transform_indices = @transform_1, window_bounds = array<i64: 9, 4, 4>}, {pipeline_mode = #tpu.pipeline_mode<synchronous>, transform_indices = @transform_2, window_bounds = array<i64: 9, 4, 4>}, {transform_indices = @transform_3, window_bounds = array<i64: 1, 4, 256>}]} {
    %0 = tpu.iota {dimensions = array<i32: 1>} : vector<4x256xi32>
    %c15_i32 = arith.constant 15 : i32
    %1 = vector.broadcast %c15_i32 : i32 to vector<4x256xi32>
    %2 = arith.andi %0, %1 : vector<4x256xi32>
    %c0_i32 = arith.constant 0 : i32
    %3 = vector.broadcast %c0_i32 : i32 to vector<4x256xi32>
    %4 = arith.cmpi sgt, %2, %3 : vector<4x256xi32>
    %c15_i32_0 = arith.constant 15 : i32
    %5 = vector.broadcast %c15_i32_0 : i32 to vector<4x256xi32>
    %6 = arith.cmpi slt, %2, %5 : vector<4x256xi32>
    %cst = arith.constant 0.000000e+00 : f32
    %7 = vector.broadcast %cst : f32 to vector<1x4x128xf32>
    %c0 = arith.constant 0 : index
    %c0_1 = arith.constant 0 : index
    %c0_2 = arith.constant 0 : index
    %8 = vector.load %arg5[%c0, %c0_1, %c0_2] : memref<1x4x512xf32, #tpu.memory_space<vmem>>, vector<1x4x128xf32>
    tpu.vector_store %arg5[%c0, %c0_1, %c0_2], %7 {strides = array<i32>} : memref<1x4x512xf32, #tpu.memory_space<vmem>>, vector<1x4x128xf32>,
    %cst_3 = arith.constant 0.000000e+00 : f32
    %9 = vector.broadcast %cst_3 : f32 to vector<1x4x128xf32>
    %c0_4 = arith.constant 0 : index
    %c0_5 = arith.constant 0 : index
    %c384 = arith.constant 384 : index
    %10 = vector.load %arg5[%c0_4, %c0_5, %c384] : memref<1x4x512xf32, #tpu.memory_space<vmem>>, vector<1x4x128xf32>
    tpu.vector_store %arg5[%c0_4, %c0_5, %c384], %9 {strides = array<i32>} : memref<1x4x512xf32, #tpu.memory_space<vmem>>, vector<1x4x128xf32>,
    %c0_6 = arith.constant 0 : index
    %c0_7 = arith.constant 0 : index
    %c0_8 = arith.constant 0 : index
    %11 = vector.load %arg1[%c0_6, %c0_7, %c0_8] : memref<1x4x256xf32, #tpu.memory_space<vmem>>, vector<1x4x256xf32>
    %12 = vector.shape_cast %11 : vector<1x4x256xf32> to vector<4x256xf32>
    %c0_9 = arith.constant 0 : index
    %c0_10 = arith.constant 0 : index
    %c128 = arith.constant 128 : index
    %13 = vector.load %arg5[%c0_9, %c0_10, %c128] : memref<1x4x512xf32, #tpu.memory_space<vmem>>, vector<1x4x256xf32>
    %14 = vector.shape_cast %13 : vector<1x4x256xf32> to vector<4x256xf32>
    %15 = vector.shape_cast %12 : vector<4x256xf32> to vector<1x4x256xf32>
    tpu.vector_store %arg5[%c0_9, %c0_10, %c128], %15 {strides = array<i32>} : memref<1x4x512xf32, #tpu.memory_space<vmem>>, vector<1x4x256xf32>,
    %cst_11 = arith.constant 0.000000e+00 : f32
    %16 = vector.broadcast %cst_11 : f32 to vector<4x256xf32>
    %c0_12 = arith.constant 0 : index
    %c0_13 = arith.constant 0 : index
    %c111 = arith.constant 111 : index
    %17 = vector.load %arg5[%c0_12, %c0_13, %c111] : memref<1x4x512xf32, #tpu.memory_space<vmem>>, vector<1x4x256xf32>
    %18 = vector.shape_cast %17 : vector<1x4x256xf32> to vector<4x256xf32>
    %cst_14 = arith.constant 0.000000e+00 : f32
    %19 = vector.broadcast %cst_14 : f32 to vector<4x256xf32>
    %20 = arith.select %4, %18, %19 : vector<4x256xi1>, vector<4x256xf32>
    %c0_15 = arith.constant 0 : index
    %c0_16 = arith.constant 0 : index
    %c0_17 = arith.constant 0 : index
    %21 = vector.load %arg2[%c0_15, %c0_16, %c0_17] : memref<9x4x4xf32, #tpu.memory_space<vmem>>, vector<1x4x4xf32>
    %22 = vector.shape_cast %21 : vector<1x4x4xf32> to vector<4x4xf32>
    %cst_18 = arith.constant dense<0.000000e+00> : vector<4x256xf32>
    %23 = tpu.matmul %22, %20, %cst_18 {dimension_numbers = #tpu.dot_dimension_numbers<[1], [0], [0], [1], [0, 0, 1, 1], [], []>} : vector<4x4xf32>, vector<4x256xf32>, vector<4x256xf32> -> vector<4x256xf32>
    %24 = arith.addf %16, %23 : vector<4x256xf32>
    %c0_19 = arith.constant 0 : index
    %c0_20 = arith.constant 0 : index
    %c112 = arith.constant 112 : index
    %25 = vector.load %arg5[%c0_19, %c0_20, %c112] : memref<1x4x512xf32, #tpu.memory_space<vmem>>, vector<1x4x256xf32>
    %26 = vector.shape_cast %25 : vector<1x4x256xf32> to vector<4x256xf32>
    %c1 = arith.constant 1 : index
    %c0_21 = arith.constant 0 : index
    %c0_22 = arith.constant 0 : index
    %27 = vector.load %arg2[%c1, %c0_21, %c0_22] : memref<9x4x4xf32, #tpu.memory_space<vmem>>, vector<1x4x4xf32>
    %28 = vector.shape_cast %27 : vector<1x4x4xf32> to vector<4x4xf32>
    %cst_23 = arith.constant dense<0.000000e+00> : vector<4x256xf32>
    %29 = tpu.matmul %28, %26, %cst_23 {dimension_numbers = #tpu.dot_dimension_numbers<[1], [0], [0], [1], [0, 0, 1, 1], [], []>} : vector<4x4xf32>, vector<4x256xf32>, vector<4x256xf32> -> vector<4x256xf32>
    %30 = arith.addf %24, %29 : vector<4x256xf32>
    %c0_24 = arith.constant 0 : index
    %c0_25 = arith.constant 0 : index
    %c113 = arith.constant 113 : index
    %31 = vector.load %arg5[%c0_24, %c0_25, %c113] : memref<1x4x512xf32, #tpu.memory_space<vmem>>, vector<1x4x256xf32>
    %32 = vector.shape_cast %31 : vector<1x4x256xf32> to vector<4x256xf32>
    %cst_26 = arith.constant 0.000000e+00 : f32
    %33 = vector.broadcast %cst_26 : f32 to vector<4x256xf32>
    %34 = arith.select %6, %32, %33 : vector<4x256xi1>, vector<4x256xf32>
    %c2 = arith.constant 2 : index
    %c0_27 = arith.constant 0 : index
    %c0_28 = arith.constant 0 : index
    %35 = vector.load %arg2[%c2, %c0_27, %c0_28] : memref<9x4x4xf32, #tpu.memory_space<vmem>>, vector<1x4x4xf32>
    %36 = vector.shape_cast %35 : vector<1x4x4xf32> to vector<4x4xf32>
    %cst_29 = arith.constant dense<0.000000e+00> : vector<4x256xf32>
    %37 = tpu.matmul %36, %34, %cst_29 {dimension_numbers = #tpu.dot_dimension_numbers<[1], [0], [0], [1], [0, 0, 1, 1], [], []>} : vector<4x4xf32>, vector<4x256xf32>, vector<4x256xf32> -> vector<4x256xf32>
    %38 = arith.addf %30, %37 : vector<4x256xf32>
    %c0_30 = arith.constant 0 : index
    %c0_31 = arith.constant 0 : index
    %c127 = arith.constant 127 : index
    %39 = vector.load %arg5[%c0_30, %c0_31, %c127] : memref<1x4x512xf32, #tpu.memory_space<vmem>>, vector<1x4x256xf32>
    %40 = vector.shape_cast %39 : vector<1x4x256xf32> to vector<4x256xf32>
    %cst_32 = arith.constant 0.000000e+00 : f32
    %41 = vector.broadcast %cst_32 : f32 to vector<4x256xf32>
    %42 = arith.select %4, %40, %41 : vector<4x256xi1>, vector<4x256xf32>
    %c3 = arith.constant 3 : index
    %c0_33 = arith.constant 0 : index
    %c0_34 = arith.constant 0 : index
    %43 = vector.load %arg2[%c3, %c0_33, %c0_34] : memref<9x4x4xf32, #tpu.memory_space<vmem>>, vector<1x4x4xf32>
    %44 = vector.shape_cast %43 : vector<1x4x4xf32> to vector<4x4xf32>
    %cst_35 = arith.constant dense<0.000000e+00> : vector<4x256xf32>
    %45 = tpu.matmul %44, %42, %cst_35 {dimension_numbers = #tpu.dot_dimension_numbers<[1], [0], [0], [1], [0, 0, 1, 1], [], []>} : vector<4x4xf32>, vector<4x256xf32>, vector<4x256xf32> -> vector<4x256xf32>
    %46 = arith.addf %38, %45 : vector<4x256xf32>
    %c0_36 = arith.constant 0 : index
    %c0_37 = arith.constant 0 : index
    %c128_38 = arith.constant 128 : index
    %47 = vector.load %arg5[%c0_36, %c0_37, %c128_38] : memref<1x4x512xf32, #tpu.memory_space<vmem>>, vector<1x4x256xf32>
    %48 = vector.shape_cast %47 : vector<1x4x256xf32> to vector<4x256xf32>
    %c4 = arith.constant 4 : index
    %c0_39 = arith.constant 0 : index
    %c0_40 = arith.constant 0 : index
    %49 = vector.load %arg2[%c4, %c0_39, %c0_40] : memref<9x4x4xf32, #tpu.memory_space<vmem>>, vector<1x4x4xf32>
    %50 = vector.shape_cast %49 : vector<1x4x4xf32> to vector<4x4xf32>
    %cst_41 = arith.constant dense<0.000000e+00> : vector<4x256xf32>
    %51 = tpu.matmul %50, %48, %cst_41 {dimension_numbers = #tpu.dot_dimension_numbers<[1], [0], [0], [1], [0, 0, 1, 1], [], []>} : vector<4x4xf32>, vector<4x256xf32>, vector<4x256xf32> -> vector<4x256xf32>
    %52 = arith.addf %46, %51 : vector<4x256xf32>
    %c0_42 = arith.constant 0 : index
    %c0_43 = arith.constant 0 : index
    %c129 = arith.constant 129 : index
    %53 = vector.load %arg5[%c0_42, %c0_43, %c129] : memref<1x4x512xf32, #tpu.memory_space<vmem>>, vector<1x4x256xf32>
    %54 = vector.shape_cast %53 : vector<1x4x256xf32> to vector<4x256xf32>
    %cst_44 = arith.constant 0.000000e+00 : f32
    %55 = vector.broadcast %cst_44 : f32 to vector<4x256xf32>
    %56 = arith.select %6, %54, %55 : vector<4x256xi1>, vector<4x256xf32>
    %c5 = arith.constant 5 : index
    %c0_45 = arith.constant 0 : index
    %c0_46 = arith.constant 0 : index
    %57 = vector.load %arg2[%c5, %c0_45, %c0_46] : memref<9x4x4xf32, #tpu.memory_space<vmem>>, vector<1x4x4xf32>
    %58 = vector.shape_cast %57 : vector<1x4x4xf32> to vector<4x4xf32>
    %cst_47 = arith.constant dense<0.000000e+00> : vector<4x256xf32>
    %59 = tpu.matmul %58, %56, %cst_47 {dimension_numbers = #tpu.dot_dimension_numbers<[1], [0], [0], [1], [0, 0, 1, 1], [], []>} : vector<4x4xf32>, vector<4x256xf32>, vector<4x256xf32> -> vector<4x256xf32>
    %60 = arith.addf %52, %59 : vector<4x256xf32>
    %c0_48 = arith.constant 0 : index
    %c0_49 = arith.constant 0 : index
    %c143 = arith.constant 143 : index
    %61 = vector.load %arg5[%c0_48, %c0_49, %c143] : memref<1x4x512xf32, #tpu.memory_space<vmem>>, vector<1x4x256xf32>
    %62 = vector.shape_cast %61 : vector<1x4x256xf32> to vector<4x256xf32>
    %cst_50 = arith.constant 0.000000e+00 : f32
    %63 = vector.broadcast %cst_50 : f32 to vector<4x256xf32>
    %64 = arith.select %4, %62, %63 : vector<4x256xi1>, vector<4x256xf32>
    %c6 = arith.constant 6 : index
    %c0_51 = arith.constant 0 : index
    %c0_52 = arith.constant 0 : index
    %65 = vector.load %arg2[%c6, %c0_51, %c0_52] : memref<9x4x4xf32, #tpu.memory_space<vmem>>, vector<1x4x4xf32>
    %66 = vector.shape_cast %65 : vector<1x4x4xf32> to vector<4x4xf32>
    %cst_53 = arith.constant dense<0.000000e+00> : vector<4x256xf32>
    %67 = tpu.matmul %66, %64, %cst_53 {dimension_numbers = #tpu.dot_dimension_numbers<[1], [0], [0], [1], [0, 0, 1, 1], [], []>} : vector<4x4xf32>, vector<4x256xf32>, vector<4x256xf32> -> vector<4x256xf32>
    %68 = arith.addf %60, %67 : vector<4x256xf32>
    %c0_54 = arith.constant 0 : index
    %c0_55 = arith.constant 0 : index
    %c144 = arith.constant 144 : index
    %69 = vector.load %arg5[%c0_54, %c0_55, %c144] : memref<1x4x512xf32, #tpu.memory_space<vmem>>, vector<1x4x256xf32>
    %70 = vector.shape_cast %69 : vector<1x4x256xf32> to vector<4x256xf32>
    %c7 = arith.constant 7 : index
    %c0_56 = arith.constant 0 : index
    %c0_57 = arith.constant 0 : index
    %71 = vector.load %arg2[%c7, %c0_56, %c0_57] : memref<9x4x4xf32, #tpu.memory_space<vmem>>, vector<1x4x4xf32>
    %72 = vector.shape_cast %71 : vector<1x4x4xf32> to vector<4x4xf32>
    %cst_58 = arith.constant dense<0.000000e+00> : vector<4x256xf32>
    %73 = tpu.matmul %72, %70, %cst_58 {dimension_numbers = #tpu.dot_dimension_numbers<[1], [0], [0], [1], [0, 0, 1, 1], [], []>} : vector<4x4xf32>, vector<4x256xf32>, vector<4x256xf32> -> vector<4x256xf32>
    %74 = arith.addf %68, %73 : vector<4x256xf32>
    %c0_59 = arith.constant 0 : index
    %c0_60 = arith.constant 0 : index
    %c145 = arith.constant 145 : index
    %75 = vector.load %arg5[%c0_59, %c0_60, %c145] : memref<1x4x512xf32, #tpu.memory_space<vmem>>, vector<1x4x256xf32>
    %76 = vector.shape_cast %75 : vector<1x4x256xf32> to vector<4x256xf32>
    %cst_61 = arith.constant 0.000000e+00 : f32
    %77 = vector.broadcast %cst_61 : f32 to vector<4x256xf32>
    %78 = arith.select %6, %76, %77 : vector<4x256xi1>, vector<4x256xf32>
    %c8 = arith.constant 8 : index
    %c0_62 = arith.constant 0 : index
    %c0_63 = arith.constant 0 : index
    %79 = vector.load %arg2[%c8, %c0_62, %c0_63] : memref<9x4x4xf32, #tpu.memory_space<vmem>>, vector<1x4x4xf32>
    %80 = vector.shape_cast %79 : vector<1x4x4xf32> to vector<4x4xf32>
    %cst_64 = arith.constant dense<0.000000e+00> : vector<4x256xf32>
    %81 = tpu.matmul %80, %78, %cst_64 {dimension_numbers = #tpu.dot_dimension_numbers<[1], [0], [0], [1], [0, 0, 1, 1], [], []>} : vector<4x4xf32>, vector<4x256xf32>, vector<4x256xf32> -> vector<4x256xf32>
    %82 = arith.addf %74, %81 : vector<4x256xf32>
    %cst_65 = arith.constant dense<0.000000e+00> : vector<4xf32>
    %83 = vector.multi_reduction <add>, %82, %cst_65 [1] : vector<4x256xf32> to vector<4xf32>
    %84 = vector.shape_cast %83 : vector<4xf32> to vector<4x1xf32>
    %cst_66 = arith.constant 3.906250e-03 : f32
    %85 = vector.broadcast %cst_66 : f32 to vector<4x1xf32>
    %86 = arith.mulf %84, %85 : vector<4x1xf32>
    %87 = vector.broadcast %86 : vector<4x1xf32> to vector<4x256xf32>
    %88 = arith.subf %82, %87 : vector<4x256xf32>
    %89 = arith.mulf %88, %88 : vector<4x256xf32>
    %cst_67 = arith.constant dense<0.000000e+00> : vector<4xf32>
    %90 = vector.multi_reduction <add>, %89, %cst_67 [1] : vector<4x256xf32> to vector<4xf32>
    %91 = vector.shape_cast %90 : vector<4xf32> to vector<4x1xf32>
    %cst_68 = arith.constant 3.906250e-03 : f32
    %92 = vector.broadcast %cst_68 : f32 to vector<4x1xf32>
    %93 = arith.mulf %91, %92 : vector<4x1xf32>
    %cst_69 = arith.constant 9.99999974E-6 : f32
    %94 = vector.broadcast %cst_69 : f32 to vector<4x1xf32>
    %95 = arith.addf %93, %94 : vector<4x1xf32>
    %96 = math.rsqrt %95 : vector<4x1xf32>
    %97 = vector.broadcast %96 : vector<4x1xf32> to vector<4x256xf32>
    %98 = arith.mulf %88, %97 : vector<4x256xf32>
    %cst_70 = arith.constant 0.000000e+00 : f32
    %99 = vector.broadcast %cst_70 : f32 to vector<4x256xf32>
    %100 = arith.maximumf %98, %99 : vector<4x256xf32>
    %c0_71 = arith.constant 0 : index
    %c0_72 = arith.constant 0 : index
    %c128_73 = arith.constant 128 : index
    %101 = vector.load %arg5[%c0_71, %c0_72, %c128_73] : memref<1x4x512xf32, #tpu.memory_space<vmem>>, vector<1x4x256xf32>
    %102 = vector.shape_cast %101 : vector<1x4x256xf32> to vector<4x256xf32>
    %103 = vector.shape_cast %100 : vector<4x256xf32> to vector<1x4x256xf32>
    tpu.vector_store %arg5[%c0_71, %c0_72, %c128_73], %103 {strides = array<i32>} : memref<1x4x512xf32, #tpu.memory_space<vmem>>, vector<1x4x256xf32>,
    %cst_74 = arith.constant 0.000000e+00 : f32
    %104 = vector.broadcast %cst_74 : f32 to vector<4x256xf32>
    %c0_75 = arith.constant 0 : index
    %c0_76 = arith.constant 0 : index
    %c111_77 = arith.constant 111 : index
    %105 = vector.load %arg5[%c0_75, %c0_76, %c111_77] : memref<1x4x512xf32, #tpu.memory_space<vmem>>, vector<1x4x256xf32>
    %106 = vector.shape_cast %105 : vector<1x4x256xf32> to vector<4x256xf32>
    %cst_78 = arith.constant 0.000000e+00 : f32
    %107 = vector.broadcast %cst_78 : f32 to vector<4x256xf32>
    %108 = arith.select %4, %106, %107 : vector<4x256xi1>, vector<4x256xf32>
    %c0_79 = arith.constant 0 : index
    %c0_80 = arith.constant 0 : index
    %c0_81 = arith.constant 0 : index
    %109 = vector.load %arg3[%c0_79, %c0_80, %c0_81] : memref<9x4x4xf32, #tpu.memory_space<vmem>>, vector<1x4x4xf32>
    %110 = vector.shape_cast %109 : vector<1x4x4xf32> to vector<4x4xf32>
    %cst_82 = arith.constant dense<0.000000e+00> : vector<4x256xf32>
    %111 = tpu.matmul %110, %108, %cst_82 {dimension_numbers = #tpu.dot_dimension_numbers<[1], [0], [0], [1], [0, 0, 1, 1], [], []>} : vector<4x4xf32>, vector<4x256xf32>, vector<4x256xf32> -> vector<4x256xf32>
    %112 = arith.addf %104, %111 : vector<4x256xf32>
    %c0_83 = arith.constant 0 : index
    %c0_84 = arith.constant 0 : index
    %c112_85 = arith.constant 112 : index
    %113 = vector.load %arg5[%c0_83, %c0_84, %c112_85] : memref<1x4x512xf32, #tpu.memory_space<vmem>>, vector<1x4x256xf32>
    %114 = vector.shape_cast %113 : vector<1x4x256xf32> to vector<4x256xf32>
    %c1_86 = arith.constant 1 : index
    %c0_87 = arith.constant 0 : index
    %c0_88 = arith.constant 0 : index
    %115 = vector.load %arg3[%c1_86, %c0_87, %c0_88] : memref<9x4x4xf32, #tpu.memory_space<vmem>>, vector<1x4x4xf32>
    %116 = vector.shape_cast %115 : vector<1x4x4xf32> to vector<4x4xf32>
    %cst_89 = arith.constant dense<0.000000e+00> : vector<4x256xf32>
    %117 = tpu.matmul %116, %114, %cst_89 {dimension_numbers = #tpu.dot_dimension_numbers<[1], [0], [0], [1], [0, 0, 1, 1], [], []>} : vector<4x4xf32>, vector<4x256xf32>, vector<4x256xf32> -> vector<4x256xf32>
    %118 = arith.addf %112, %117 : vector<4x256xf32>
    %c0_90 = arith.constant 0 : index
    %c0_91 = arith.constant 0 : index
    %c113_92 = arith.constant 113 : index
    %119 = vector.load %arg5[%c0_90, %c0_91, %c113_92] : memref<1x4x512xf32, #tpu.memory_space<vmem>>, vector<1x4x256xf32>
    %120 = vector.shape_cast %119 : vector<1x4x256xf32> to vector<4x256xf32>
    %cst_93 = arith.constant 0.000000e+00 : f32
    %121 = vector.broadcast %cst_93 : f32 to vector<4x256xf32>
    %122 = arith.select %6, %120, %121 : vector<4x256xi1>, vector<4x256xf32>
    %c2_94 = arith.constant 2 : index
    %c0_95 = arith.constant 0 : index
    %c0_96 = arith.constant 0 : index
    %123 = vector.load %arg3[%c2_94, %c0_95, %c0_96] : memref<9x4x4xf32, #tpu.memory_space<vmem>>, vector<1x4x4xf32>
    %124 = vector.shape_cast %123 : vector<1x4x4xf32> to vector<4x4xf32>
    %cst_97 = arith.constant dense<0.000000e+00> : vector<4x256xf32>
    %125 = tpu.matmul %124, %122, %cst_97 {dimension_numbers = #tpu.dot_dimension_numbers<[1], [0], [0], [1], [0, 0, 1, 1], [], []>} : vector<4x4xf32>, vector<4x256xf32>, vector<4x256xf32> -> vector<4x256xf32>
    %126 = arith.addf %118, %125 : vector<4x256xf32>
    %c0_98 = arith.constant 0 : index
    %c0_99 = arith.constant 0 : index
    %c127_100 = arith.constant 127 : index
    %127 = vector.load %arg5[%c0_98, %c0_99, %c127_100] : memref<1x4x512xf32, #tpu.memory_space<vmem>>, vector<1x4x256xf32>
    %128 = vector.shape_cast %127 : vector<1x4x256xf32> to vector<4x256xf32>
    %cst_101 = arith.constant 0.000000e+00 : f32
    %129 = vector.broadcast %cst_101 : f32 to vector<4x256xf32>
    %130 = arith.select %4, %128, %129 : vector<4x256xi1>, vector<4x256xf32>
    %c3_102 = arith.constant 3 : index
    %c0_103 = arith.constant 0 : index
    %c0_104 = arith.constant 0 : index
    %131 = vector.load %arg3[%c3_102, %c0_103, %c0_104] : memref<9x4x4xf32, #tpu.memory_space<vmem>>, vector<1x4x4xf32>
    %132 = vector.shape_cast %131 : vector<1x4x4xf32> to vector<4x4xf32>
    %cst_105 = arith.constant dense<0.000000e+00> : vector<4x256xf32>
    %133 = tpu.matmul %132, %130, %cst_105 {dimension_numbers = #tpu.dot_dimension_numbers<[1], [0], [0], [1], [0, 0, 1, 1], [], []>} : vector<4x4xf32>, vector<4x256xf32>, vector<4x256xf32> -> vector<4x256xf32>
    %134 = arith.addf %126, %133 : vector<4x256xf32>
    %c0_106 = arith.constant 0 : index
    %c0_107 = arith.constant 0 : index
    %c128_108 = arith.constant 128 : index
    %135 = vector.load %arg5[%c0_106, %c0_107, %c128_108] : memref<1x4x512xf32, #tpu.memory_space<vmem>>, vector<1x4x256xf32>
    %136 = vector.shape_cast %135 : vector<1x4x256xf32> to vector<4x256xf32>
    %c4_109 = arith.constant 4 : index
    %c0_110 = arith.constant 0 : index
    %c0_111 = arith.constant 0 : index
    %137 = vector.load %arg3[%c4_109, %c0_110, %c0_111] : memref<9x4x4xf32, #tpu.memory_space<vmem>>, vector<1x4x4xf32>
    %138 = vector.shape_cast %137 : vector<1x4x4xf32> to vector<4x4xf32>
    %cst_112 = arith.constant dense<0.000000e+00> : vector<4x256xf32>
    %139 = tpu.matmul %138, %136, %cst_112 {dimension_numbers = #tpu.dot_dimension_numbers<[1], [0], [0], [1], [0, 0, 1, 1], [], []>} : vector<4x4xf32>, vector<4x256xf32>, vector<4x256xf32> -> vector<4x256xf32>
    %140 = arith.addf %134, %139 : vector<4x256xf32>
    %c0_113 = arith.constant 0 : index
    %c0_114 = arith.constant 0 : index
    %c129_115 = arith.constant 129 : index
    %141 = vector.load %arg5[%c0_113, %c0_114, %c129_115] : memref<1x4x512xf32, #tpu.memory_space<vmem>>, vector<1x4x256xf32>
    %142 = vector.shape_cast %141 : vector<1x4x256xf32> to vector<4x256xf32>
    %cst_116 = arith.constant 0.000000e+00 : f32
    %143 = vector.broadcast %cst_116 : f32 to vector<4x256xf32>
    %144 = arith.select %6, %142, %143 : vector<4x256xi1>, vector<4x256xf32>
    %c5_117 = arith.constant 5 : index
    %c0_118 = arith.constant 0 : index
    %c0_119 = arith.constant 0 : index
    %145 = vector.load %arg3[%c5_117, %c0_118, %c0_119] : memref<9x4x4xf32, #tpu.memory_space<vmem>>, vector<1x4x4xf32>
    %146 = vector.shape_cast %145 : vector<1x4x4xf32> to vector<4x4xf32>
    %cst_120 = arith.constant dense<0.000000e+00> : vector<4x256xf32>
    %147 = tpu.matmul %146, %144, %cst_120 {dimension_numbers = #tpu.dot_dimension_numbers<[1], [0], [0], [1], [0, 0, 1, 1], [], []>} : vector<4x4xf32>, vector<4x256xf32>, vector<4x256xf32> -> vector<4x256xf32>
    %148 = arith.addf %140, %147 : vector<4x256xf32>
    %c0_121 = arith.constant 0 : index
    %c0_122 = arith.constant 0 : index
    %c143_123 = arith.constant 143 : index
    %149 = vector.load %arg5[%c0_121, %c0_122, %c143_123] : memref<1x4x512xf32, #tpu.memory_space<vmem>>, vector<1x4x256xf32>
    %150 = vector.shape_cast %149 : vector<1x4x256xf32> to vector<4x256xf32>
    %cst_124 = arith.constant 0.000000e+00 : f32
    %151 = vector.broadcast %cst_124 : f32 to vector<4x256xf32>
    %152 = arith.select %4, %150, %151 : vector<4x256xi1>, vector<4x256xf32>
    %c6_125 = arith.constant 6 : index
    %c0_126 = arith.constant 0 : index
    %c0_127 = arith.constant 0 : index
    %153 = vector.load %arg3[%c6_125, %c0_126, %c0_127] : memref<9x4x4xf32, #tpu.memory_space<vmem>>, vector<1x4x4xf32>
    %154 = vector.shape_cast %153 : vector<1x4x4xf32> to vector<4x4xf32>
    %cst_128 = arith.constant dense<0.000000e+00> : vector<4x256xf32>
    %155 = tpu.matmul %154, %152, %cst_128 {dimension_numbers = #tpu.dot_dimension_numbers<[1], [0], [0], [1], [0, 0, 1, 1], [], []>} : vector<4x4xf32>, vector<4x256xf32>, vector<4x256xf32> -> vector<4x256xf32>
    %156 = arith.addf %148, %155 : vector<4x256xf32>
    %c0_129 = arith.constant 0 : index
    %c0_130 = arith.constant 0 : index
    %c144_131 = arith.constant 144 : index
    %157 = vector.load %arg5[%c0_129, %c0_130, %c144_131] : memref<1x4x512xf32, #tpu.memory_space<vmem>>, vector<1x4x256xf32>
    %158 = vector.shape_cast %157 : vector<1x4x256xf32> to vector<4x256xf32>
    %c7_132 = arith.constant 7 : index
    %c0_133 = arith.constant 0 : index
    %c0_134 = arith.constant 0 : index
    %159 = vector.load %arg3[%c7_132, %c0_133, %c0_134] : memref<9x4x4xf32, #tpu.memory_space<vmem>>, vector<1x4x4xf32>
    %160 = vector.shape_cast %159 : vector<1x4x4xf32> to vector<4x4xf32>
    %cst_135 = arith.constant dense<0.000000e+00> : vector<4x256xf32>
    %161 = tpu.matmul %160, %158, %cst_135 {dimension_numbers = #tpu.dot_dimension_numbers<[1], [0], [0], [1], [0, 0, 1, 1], [], []>} : vector<4x4xf32>, vector<4x256xf32>, vector<4x256xf32> -> vector<4x256xf32>
    %162 = arith.addf %156, %161 : vector<4x256xf32>
    %c0_136 = arith.constant 0 : index
    %c0_137 = arith.constant 0 : index
    %c145_138 = arith.constant 145 : index
    %163 = vector.load %arg5[%c0_136, %c0_137, %c145_138] : memref<1x4x512xf32, #tpu.memory_space<vmem>>, vector<1x4x256xf32>
    %164 = vector.shape_cast %163 : vector<1x4x256xf32> to vector<4x256xf32>
    %cst_139 = arith.constant 0.000000e+00 : f32
    %165 = vector.broadcast %cst_139 : f32 to vector<4x256xf32>
    %166 = arith.select %6, %164, %165 : vector<4x256xi1>, vector<4x256xf32>
    %c8_140 = arith.constant 8 : index
    %c0_141 = arith.constant 0 : index
    %c0_142 = arith.constant 0 : index
    %167 = vector.load %arg3[%c8_140, %c0_141, %c0_142] : memref<9x4x4xf32, #tpu.memory_space<vmem>>, vector<1x4x4xf32>
    %168 = vector.shape_cast %167 : vector<1x4x4xf32> to vector<4x4xf32>
    %cst_143 = arith.constant dense<0.000000e+00> : vector<4x256xf32>
    %169 = tpu.matmul %168, %166, %cst_143 {dimension_numbers = #tpu.dot_dimension_numbers<[1], [0], [0], [1], [0, 0, 1, 1], [], []>} : vector<4x4xf32>, vector<4x256xf32>, vector<4x256xf32> -> vector<4x256xf32>
    %170 = arith.addf %162, %169 : vector<4x256xf32>
    %cst_144 = arith.constant dense<0.000000e+00> : vector<4xf32>
    %171 = vector.multi_reduction <add>, %170, %cst_144 [1] : vector<4x256xf32> to vector<4xf32>
    %172 = vector.shape_cast %171 : vector<4xf32> to vector<4x1xf32>
    %cst_145 = arith.constant 3.906250e-03 : f32
    %173 = vector.broadcast %cst_145 : f32 to vector<4x1xf32>
    %174 = arith.mulf %172, %173 : vector<4x1xf32>
    %175 = vector.broadcast %174 : vector<4x1xf32> to vector<4x256xf32>
    %176 = arith.subf %170, %175 : vector<4x256xf32>
    %177 = arith.mulf %176, %176 : vector<4x256xf32>
    %cst_146 = arith.constant dense<0.000000e+00> : vector<4xf32>
    %178 = vector.multi_reduction <add>, %177, %cst_146 [1] : vector<4x256xf32> to vector<4xf32>
    %179 = vector.shape_cast %178 : vector<4xf32> to vector<4x1xf32>
    %cst_147 = arith.constant 3.906250e-03 : f32
    %180 = vector.broadcast %cst_147 : f32 to vector<4x1xf32>
    %181 = arith.mulf %179, %180 : vector<4x1xf32>
    %cst_148 = arith.constant 9.99999974E-6 : f32
    %182 = vector.broadcast %cst_148 : f32 to vector<4x1xf32>
    %183 = arith.addf %181, %182 : vector<4x1xf32>
    %184 = math.rsqrt %183 : vector<4x1xf32>
    %185 = vector.broadcast %184 : vector<4x1xf32> to vector<4x256xf32>
    %186 = arith.mulf %176, %185 : vector<4x256xf32>
    %187 = arith.addf %186, %12 : vector<4x256xf32>
    %c0_149 = arith.constant 0 : index
    %c0_150 = arith.constant 0 : index
    %c0_151 = arith.constant 0 : index
    %188 = vector.load %arg4[%c0_149, %c0_150, %c0_151] : memref<1x4x256xf32, #tpu.memory_space<vmem>>, vector<1x4x256xf32>
    %189 = vector.shape_cast %188 : vector<1x4x256xf32> to vector<4x256xf32>
    %190 = vector.shape_cast %187 : vector<4x256xf32> to vector<1x4x256xf32>
    tpu.vector_store %arg4[%c0_149, %c0_150, %c0_151], %190 {strides = array<i32>} : memref<1x4x256xf32, #tpu.memory_space<vmem>>, vector<1x4x256xf32>,
    return
  }
  func.func @transform_0(%arg0: i32) -> (i32, i32, i32) {
    %c0_i32 = arith.constant 0 : i32
    %c0_i32_0 = arith.constant 0 : i32
    %c0_i32_1 = arith.constant 0 : i32
    return %arg0, %c0_i32, %c0_i32_0 : i32, i32, i32
  }
  func.func @transform_1(%arg0: i32) -> (i32, i32, i32) {
    %c0_i32 = arith.constant 0 : i32
    %c0_i32_0 = arith.constant 0 : i32
    %c0_i32_1 = arith.constant 0 : i32
    %c0_i32_2 = arith.constant 0 : i32
    return %c0_i32, %c0_i32_0, %c0_i32_1 : i32, i32, i32
  }
  func.func @transform_2(%arg0: i32) -> (i32, i32, i32) {
    %c0_i32 = arith.constant 0 : i32
    %c0_i32_0 = arith.constant 0 : i32
    %c0_i32_1 = arith.constant 0 : i32
    %c0_i32_2 = arith.constant 0 : i32
    return %c0_i32, %c0_i32_0, %c0_i32_1 : i32, i32, i32
  }
  func.func @transform_3(%arg0: i32) -> (i32, i32, i32) {
    %c0_i32 = arith.constant 0 : i32
    %c0_i32_0 = arith.constant 0 : i32
    %c0_i32_1 = arith.constant 0 : i32
    return %arg0, %c0_i32, %c0_i32_0 : i32, i32, i32
  }
}

</mosaic_0001>

<llo_original>
// kernel: tpu_custom_call.1
$region0: #{tpu_custom_call.1}
  #allocation0 [shape = 'u32[]', space=smem, size = 0x4, offset = 0x4, fixed_abs, tag = 'smem constant byte address 0x4 - core index']
  #allocation1 [shape = 'u32[144,128]{1,0:T(1,128)}', space=vmem, size = 0x12000, scoped, tag = 'internal scratch']
  #allocation2 [shape = 'f32[1,4,512]{2,1,0:T(4,128)}', space=vmem, size = 0x2000, scoped, tag = 'scratch operand']
  %s0 = inlined_call_operand.vmem [shape: f32[2,4,256], index: 0, kind: input, shape index: {}]
  %s1 = inlined_call_operand.vmem [shape: f32[9,4,4], index: 1, kind: input, shape index: {}]
  %s2 = inlined_call_operand.vmem [shape: f32[9,4,4], index: 2, kind: input, shape index: {}]
  %s3 = inlined_call_operand.hbm [shape: f32[2,4,256], index: 3, kind: output, shape index: {}]
  %s4 = sld [smem:[#allocation0]]
  $region45: #{tpu_custom_call.1} parent=0
    _
  %s6 = ssub.s32 1, %s4
  %s7 = scalar_select 0, %s6, %s4
  $region1: #{tpu_custom_call.1} parent=0
    #allocation3 [shape = 'u8[8192]{0}', space=vmem, size = 0x2000, scoped, tag = 'output window, operand 0']
    #allocation4 [shape = 's32[2]{0}', space=sflag, size = 0x8, scoped, tag = 'scoped memory for tpu_custom_call.1']
    %8 = vsyncpa [#allocation4], 0
    %s9 = scalar_lea.sflag [#allocation4], 1
    %10 = vsyncpa %s9, 0
    loop: start=0, step=1, limit=4
    $region2: #{tpu_custom_call.1} parent=1 // loop_pre_header
      _
    $region3: #{tpu_custom_call.1} parent=1 // loop_header
      %s12 = sphi 0, %s16
      %p13 = scmp.ge.s32.totalorder %s12, 4
      %s22 = sphi 0, %s24
      %s25 = sphi 0, %s22
      %s26 = sphi 0, %s25
      %s42 = sphi 0, %s26
      %s46 = sphi 0, %s46
      %s48 = sphi 0, %s46
      %s49 = sphi 0, %s48
      %s63 = sphi 0, %s49
      %s67 = sphi 0, %s67
      %s69 = sphi 0, %s67
      %s70 = sphi 0, %s69
      %s84 = sphi 0, %s70
      %s90 = sphi 0, %s92
      %s93 = sphi 0, %s90
      %s94 = sphi 0, %s93
      %s110 = sphi 0, %s94
    $region4: #{tpu_custom_call.1} parent=1 // loop_header_branch
      %15 = sbr.rel (%p13) target = $region8
    $region5: #{tpu_custom_call.1} parent=1 // loop_body
      %s17 = ssub.s32 %s12, 1
      %s18 = ssub.s32 %s12, 2
      %s19 = sadd.s32 %s12, 1
      %s20 = ssub.s32 %s12, %s19
      %p21 = scmp.eq.s32.totalorder %s20, 0
      %s23 = sadd.s32 %s22, 1
      %s24 = scalar_select %p21, %s22, %s23
      %p27 = pneg %p21
      %p28 = scmp.eq.s32.totalorder %s12, 1
      %p29 = por %p27, %p28
      %p30 = scmp.ne.s32.totalorder %s22, %s25
      %p31 = scmp.eq.s32.totalorder %s12, 0
      %p32 = por %p30, %p31
      %p33 = scmp.ne.s32.totalorder %s22, %s25
      %p34 = scmp.eq.s32.totalorder %s17, 1
      %p35 = por %p33, %p34
      %p36 = scmp.ne.s32.totalorder %s25, %s26
      %p37 = scmp.eq.s32.totalorder %s17, 0
      %p38 = por %p36, %p37
      %p39 = scmp.ne.s32.totalorder %s25, %s26
      %p40 = scmp.eq.s32.totalorder %s18, 1
      %p41 = por %p39, %p40
      %p43 = scmp.ne.s32.totalorder %s26, %s42
      %p44 = scmp.eq.s32.totalorder %s18, 0
      %p45 = por %p43, %p44
      %s47 = sadd.s32 %s46, 1
      %p50 = scmp.eq.s32.totalorder %s12, 1
      %p51 = scmp.ne.s32.totalorder %s46, %s48
      %p52 = scmp.eq.s32.totalorder %s12, 0
      %p53 = por %p51, %p52
      %p54 = scmp.ne.s32.totalorder %s46, %s48
      %p55 = scmp.eq.s32.totalorder %s17, 1
      %p56 = por %p54, %p55
      %p57 = scmp.ne.s32.totalorder %s48, %s49
      %p58 = scmp.eq.s32.totalorder %s17, 0
      %p59 = por %p57, %p58
      %p60 = scmp.ne.s32.totalorder %s48, %s49
      %p61 = scmp.eq.s32.totalorder %s18, 1
      %p62 = por %p60, %p61
      %p64 = scmp.ne.s32.totalorder %s49, %s63
      %p65 = scmp.eq.s32.totalorder %s18, 0
      %p66 = por %p64, %p65
      %s68 = sadd.s32 %s67, 1
      %p71 = scmp.eq.s32.totalorder %s12, 1
      %p72 = scmp.ne.s32.totalorder %s67, %s69
      %p73 = scmp.eq.s32.totalorder %s12, 0
      %p74 = por %p72, %p73
      %p75 = scmp.ne.s32.totalorder %s67, %s69
      %p76 = scmp.eq.s32.totalorder %s17, 1
      %p77 = por %p75, %p76
      %p78 = scmp.ne.s32.totalorder %s69, %s70
      %p79 = scmp.eq.s32.totalorder %s17, 0
      %p80 = por %p78, %p79
      %p81 = scmp.ne.s32.totalorder %s69, %s70
      %p82 = scmp.eq.s32.totalorder %s18, 1
      %p83 = por %p81, %p82
      %p85 = scmp.ne.s32.totalorder %s70, %s84
      %p86 = scmp.eq.s32.totalorder %s18, 0
      %p87 = por %p85, %p86
      %s88 = ssub.s32 %s12, %s19
      %p89 = scmp.eq.s32.totalorder %s88, 0
      %s91 = sadd.s32 %s90, 1
      %s92 = scalar_select %p89, %s90, %s91
      %p95 = pneg %p89
      %p96 = scmp.eq.s32.totalorder %s12, 1
      %p97 = por %p95, %p96
      %p98 = scmp.ne.s32.totalorder %s90, %s93
      %p99 = scmp.eq.s32.totalorder %s12, 0
      %p100 = por %p98, %p99
      %p101 = scmp.ne.s32.totalorder %s90, %s93
      %p102 = scmp.eq.s32.totalorder %s17, 1
      %p103 = por %p101, %p102
      %p104 = scmp.ne.s32.totalorder %s93, %s94
      %p105 = scmp.eq.s32.totalorder %s17, 0
      %p106 = por %p104, %p105
      %p107 = scmp.ne.s32.totalorder %s93, %s94
      %p108 = scmp.eq.s32.totalorder %s18, 1
      %p109 = por %p107, %p108
      %p111 = scmp.ne.s32.totalorder %s94, %s110
      %p112 = scmp.eq.s32.totalorder %s18, 0
      %p113 = por %p111, %p112
      %p114 = scmp.le.s32.totalorder 1, %s12
      %p115 = scmp.lt.s32.totalorder %s12, 3
      %p116 = pnand %p114, %p115
      %p117 = pneg %p116
      // Predicated region
      $region9: #{tpu_custom_call.1} parent=5 // pred_check
        _
      $region10: #{tpu_custom_call.1} parent=5 // pred_check_branch
        %119 = sbr.rel (%p116) target = $region12
      $region11: #{tpu_custom_call.1} parent=5 // pred_region
        %s120 = ssub.s32 %s12, 1
        // Predicated region
        $region13: #{tpu_custom_call.1} parent=11 // pred_check
          %p121 = pneg %p59
        $region14: #{tpu_custom_call.1} parent=11 // pred_check_branch
          %123 = sbr.rel (%p121) target = $region16
        $region15: #{tpu_custom_call.1} parent=11 // pred_region
          _
        $region16: #{tpu_custom_call.1} parent=11 // pred_fallthru
          _
        // Predicated region
        $region17: #{tpu_custom_call.1} parent=11 // pred_check
          %p124 = pneg %p80
        $region18: #{tpu_custom_call.1} parent=11 // pred_check_branch
          %126 = sbr.rel (%p124) target = $region20
        $region19: #{tpu_custom_call.1} parent=11 // pred_region
          _
        $region20: #{tpu_custom_call.1} parent=11 // pred_fallthru
          _
      $region12: #{tpu_custom_call.1} parent=5 // pred_fallthru
        _
      %p127 = scmp.lt.s32.totalorder %s12, 2
      // Predicated region
      $region21: #{tpu_custom_call.1} parent=5 // pred_check
        %p128 = pneg %p127
      $region22: #{tpu_custom_call.1} parent=5 // pred_check_branch
        %130 = sbr.rel (%p128) target = $region24
      $region23: #{tpu_custom_call.1} parent=5 // pred_region
        // Predicated region
        $region25: #{tpu_custom_call.1} parent=23 // pred_check
          %p131 = pneg %p32
        $region26: #{tpu_custom_call.1} parent=23 // pred_check_branch
          %133 = sbr.rel (%p131) target = $region28
        $region27: #{tpu_custom_call.1} parent=23 // pred_region
          %p134 = scmp.lt.s32.totalorder %s12, 1
          %s135 = scalar_select %p134, %s12, 1
          %s136 = smul.addr %s135, 2
          %s137 = smul.addr %s136, 4
          %s138 = scalar_lea.vmem %s0, %s137
        $region28: #{tpu_custom_call.1} parent=23 // pred_fallthru
          _
      $region24: #{tpu_custom_call.1} parent=5 // pred_fallthru
        _
      %p139 = scmp.le.s32.totalorder 1, %s12
      %p140 = scmp.lt.s32.totalorder %s12, 3
      %p141 = pnand %p139, %p140
      %p142 = pneg %p141
      // Predicated region
      $region29: #{tpu_custom_call.1} parent=5 // pred_check
        _
      $region30: #{tpu_custom_call.1} parent=5 // pred_check_branch
        %144 = sbr.rel (%p141) target = $region32
      $region31: #{tpu_custom_call.1} parent=5 // pred_region
        %s145 = ssub.s32 %s12, 1
        %p146 = scmp.lt.s32.totalorder %s17, 1
        %s147 = scalar_select %p146, %s17, 1
        %s148 = smul.addr %s147, 2
        %s149 = smul.addr %s148, 4
        %s150 = scalar_lea.vmem %s0, %s149
        %p151 = pneg %p38
        %p152 = pneg %p35
        %p153 = pneg %p59
        %p154 = pneg %p56
        %p155 = pneg %p80
        %p156 = pneg %p77
        %p157 = pneg %p106
        %p158 = pneg %p103
        %s159 = sand.u32 %s93, 1
        %s160 = scalar_lea.sflag [#allocation4], %s159
        %s161 = sand.u32 %s93, 1
        %s162 = smul.addr %s161, 8
        %s163 = scalar_lea.vmem [#allocation3], %s162
        %p164 = scmp.lt.s32.totalorder %s17, 1
        %s165 = scalar_select %p164, %s17, 1
        %s166 = smul.addr %s165, 2
        %s167 = smul.addr %s166, 4
        %s168 = scalar_lea.vmem %s0, %s167
        %v169 = vlaneseq
        %v170 = vand.u32 %v169, 127
        %v171 = vadd.s32 %v170, 128
        %v172 = vand.u32 %v170, 15
        %v173 = vand.u32 %v171, 15
        %vm174 = vcmp.gt.s32.totalorder %v172, 0
        %vm175 = vcmp.gt.s32.totalorder %v173, 0
        %vm176 = vcmp.lt.s32.totalorder %v172, 15
        %vm177 = vcmp.lt.s32.totalorder %v173, 15
        %178 = vst [vmem:[#allocation2] sm:$0xf] 0.0
        %179 = vst [vmem:[#allocation2 + $0xc] sm:$0xf] 0.0
        %v180 = vld [vmem:[%s168] sm:$0xff]
        %181 = vst [vmem:[#allocation2 + $0x4] sm:$0xff] %v180
        %v182 = vld [vmem:[#allocation2] sm:$0xff]
        %v183 = vld [vmem:[#allocation2 + $0x8] sm:$0xf]
        %v186 = vcombine.high %v182, %v182
        %187 = vrot.lane.b32.xlu0 %v182, 17
        %v188 = vpop.permute.xlu0 %187
        %189 = vrot.lane.b32.xlu0 %v186, 17
        %v190 = vpop.permute.xlu0 %189
        %191 = vrot.lane.b32.xlu0 %v183, 17
        %v192 = vpop.permute.xlu0 %191
        %vm193 = vcmask 138240
        %v194 = vsel %vm193, %v188, %v190
        %v195 = vsel %vm193, %v190, %v192
        %v198 = vsel %vm174, %v194, 0.0
        %v199 = vsel %vm175, %v195, 0.0
        %v200 = vld [vmem:[%s1] sm:$0xf]
        %s201 = scalar_lea.vmem %s1, 4
        %v202 = vld [vmem:[%s201] sm:$0xf]
        %203 = vrot.lane.b32.xlu0 %v182, 16
        %v204 = vpop.permute.xlu0 %203
        %205 = vrot.lane.b32.xlu0 %v186, 16
        %v206 = vpop.permute.xlu0 %205
        %207 = vrot.lane.b32.xlu0 %v183, 16
        %v208 = vpop.permute.xlu0 %207
        %vm209 = vcmask 130048
        %v210 = vsel %vm209, %v204, %v206
        %v211 = vsel %vm209, %v206, %v208
        %vm212 = vcmask 31744
        %v214 = vsel %vm212, %v202, 0
        %vm216 = vcmask 1043456
        %v217 = vsel %vm216, %v210, 0
        %v219 = vsel %vm216, %v211, 0
        %221 = vmatprep.subr.mxu0 0.0
        %222 = vmatpush1.msra.mxu0 0.0
        %223 = vmatprep.subr.mxu0 0.0
        %224 = vmatpush1.msra.mxu0 0.0
        %225 = vmatprep.subr.mxu0 0.0
        %226 = vmatpush1.msra.mxu0 0.0
        %227 = vmatprep.subr.mxu0 0.0
        %228 = vmatpush1.msra.mxu0 0.0
        %229 = vmatprep.subr.mxu0 0.0
        %230 = vmatpush1.msra.mxu0 0.0
        %231 = vmatprep.subr.mxu0 0.0
        %232 = vmatpush1.msra.mxu0 0.0
        %233 = vmatprep.subr.mxu0 0.0
        %234 = vmatpush1.msra.mxu0 0.0
        %235 = vmatprep.subr.mxu0 0.0
        %236 = vmatpush1.msra.mxu0 0.0
        %237 = vmatprep.subr.mxu0 0.0
        %238 = vmatpush1.msra.mxu0 0.0
        %239 = vmatprep.subr.mxu0 0.0
        %240 = vmatpush1.msra.mxu0 0.0
        %241 = vmatprep.subr.mxu0 0.0
        %242 = vmatpush1.msra.mxu0 0.0
        %243 = vmatprep.subr.mxu0 0.0
        %244 = vmatpush1.msra.mxu0 0.0
        %245 = vmatprep.subr.mxu0 0.0
        %246 = vmatpush1.msra.mxu0 0.0
        %247 = vmatprep.subr.mxu0 0.0
        %248 = vmatpush1.msra.mxu0 0.0
        %249 = vmatprep.subr.mxu0 0.0
        %250 = vmatpush1.msra.mxu0 0.0
        %251 = vmatprep.subr.mxu0 %v219
        %252 = vmatpush1.msra.mxu0 %v217
        %253 = vmatprep.subr.mxu0 0.0
        %254 = vmatpush2.msra.mxu0 0.0
        %255 = vmatprep.subr.mxu0 0.0
        %256 = vmatpush2.msra.mxu0 0.0
        %257 = vmatprep.subr.mxu0 0.0
        %258 = vmatpush2.msra.mxu0 0.0
        %259 = vmatprep.subr.mxu0 0.0
        %260 = vmatpush2.msra.mxu0 0.0
        %261 = vmatprep.subr.mxu0 0.0
        %262 = vmatpush2.msra.mxu0 0.0
        %263 = vmatprep.subr.mxu0 0.0
        %264 = vmatpush2.msra.mxu0 0.0
        %265 = vmatprep.subr.mxu0 0.0
        %266 = vmatpush2.msra.mxu0 0.0
        %267 = vmatprep.subr.mxu0 0.0
        %268 = vmatpush2.msra.mxu0 0.0
        %269 = vmatprep.subr.mxu0 0.0
        %270 = vmatpush2.msra.mxu0 0.0
        %271 = vmatprep.subr.mxu0 0.0
        %272 = vmatpush2.msra.mxu0 0.0
        %273 = vmatprep.subr.mxu0 0.0
        %274 = vmatpush2.msra.mxu0 0.0
        %275 = vmatprep.subr.mxu0 0.0
        %276 = vmatpush2.msra.mxu0 0.0
        %277 = vmatprep.subr.mxu0 0.0
        %278 = vmatpush2.msra.mxu0 0.0
        %279 = vmatprep.subr.mxu0 0.0
        %280 = vmatpush2.msra.mxu0 0.0
        %281 = vmatprep.subr.mxu0 0.0
        %282 = vmatpush2.msra.mxu0 0.0
        %283 = vmatprep.subr.mxu0 0.0
        %284 = vmatpush2.msra.mxu0 0.0
        %285 = vmatprep.mubr.f32.mxu0 0.0
        %286 = vmatmul.mubr.f32.gmra.mxu0 %v214
        %v287 = vpop.f32.mrf.mxu0
        %v288 = vadd.f32 0.0, %v287
        %v289 = vpop.f32.mrf.mxu0
        %v290 = vadd.f32 0.0, %v289
        %291 = vdwg.mxu0
        %v293 = vsel %vm212, %v200, 0
        %v296 = vsel %vm216, %v198, 0
        %v299 = vsel %vm216, %v199, 0
        %301 = vmatprep.subr.mxu0 0.0
        %302 = vmatpush1.msra.mxu0 0.0
        %303 = vmatprep.subr.mxu0 0.0
        %304 = vmatpush1.msra.mxu0 0.0
        %305 = vmatprep.subr.mxu0 0.0
        %306 = vmatpush1.msra.mxu0 0.0
        %307 = vmatprep.subr.mxu0 0.0
        %308 = vmatpush1.msra.mxu0 0.0
        %309 = vmatprep.subr.mxu0 0.0
        %310 = vmatpush1.msra.mxu0 0.0
        %311 = vmatprep.subr.mxu0 0.0
        %312 = vmatpush1.msra.mxu0 0.0
        %313 = vmatprep.subr.mxu0 0.0
        %314 = vmatpush1.msra.mxu0 0.0
        %315 = vmatprep.subr.mxu0 0.0
        %316 = vmatpush1.msra.mxu0 0.0
        %317 = vmatprep.subr.mxu0 0.0
        %318 = vmatpush1.msra.mxu0 0.0
        %319 = vmatprep.subr.mxu0 0.0
        %320 = vmatpush1.msra.mxu0 0.0
        %321 = vmatprep.subr.mxu0 0.0
        %322 = vmatpush1.msra.mxu0 0.0
        %323 = vmatprep.subr.mxu0 0.0
        %324 = vmatpush1.msra.mxu0 0.0
        %325 = vmatprep.subr.mxu0 0.0
        %326 = vmatpush1.msra.mxu0 0.0
        %327 = vmatprep.subr.mxu0 0.0
        %328 = vmatpush1.msra.mxu0 0.0
        %329 = vmatprep.subr.mxu0 0.0
        %330 = vmatpush1.msra.mxu0 0.0
        %331 = vmatprep.subr.mxu0 %v299
        %332 = vmatpush1.msra.mxu0 %v296
        %333 = vmatprep.subr.mxu0 0.0
        %334 = vmatpush2.msra.mxu0 0.0
        %335 = vmatprep.subr.mxu0 0.0
        %336 = vmatpush2.msra.mxu0 0.0
        %337 = vmatprep.subr.mxu0 0.0
        %338 = vmatpush2.msra.mxu0 0.0
        %339 = vmatprep.subr.mxu0 0.0
        %340 = vmatpush2.msra.mxu0 0.0
        %341 = vmatprep.subr.mxu0 0.0
        %342 = vmatpush2.msra.mxu0 0.0
        %343 = vmatprep.subr.mxu0 0.0
        %344 = vmatpush2.msra.mxu0 0.0
        %345 = vmatprep.subr.mxu0 0.0
        %346 = vmatpush2.msra.mxu0 0.0
        %347 = vmatprep.subr.mxu0 0.0
        %348 = vmatpush2.msra.mxu0 0.0
        %349 = vmatprep.subr.mxu0 0.0
        %350 = vmatpush2.msra.mxu0 0.0
        %351 = vmatprep.subr.mxu0 0.0
        %352 = vmatpush2.msra.mxu0 0.0
        %353 = vmatprep.subr.mxu0 0.0
        %354 = vmatpush2.msra.mxu0 0.0
        %355 = vmatprep.subr.mxu0 0.0
        %356 = vmatpush2.msra.mxu0 0.0
        %357 = vmatprep.subr.mxu0 0.0
        %358 = vmatpush2.msra.mxu0 0.0
        %359 = vmatprep.subr.mxu0 0.0
        %360 = vmatpush2.msra.mxu0 0.0
        %361 = vmatprep.subr.mxu0 0.0
        %362 = vmatpush2.msra.mxu0 0.0
        %363 = vmatprep.subr.mxu0 0.0
        %364 = vmatpush2.msra.mxu0 0.0
        %365 = vmatprep.mubr.f32.mxu0 0.0
        %366 = vmatmul.mubr.f32.gmra.mxu0 %v293
        %v367 = vpop.f32.mrf.mxu0
        %v368 = vadd.f32 %v288, %v367
        %v369 = vpop.f32.mrf.mxu0
        %v370 = vadd.f32 %v290, %v369
        %371 = vdwg.mxu0
        %v372 = vld [vmem:[#allocation2] sm:$0xff]
        %v373 = vld [vmem:[#allocation2 + $0x8] sm:$0xf]
        %v376 = vcombine.high %v372, %v372
        %377 = vrot.lane.b32.xlu0 %v372, 15
        %v378 = vpop.permute.xlu0 %377
        %379 = vrot.lane.b32.xlu0 %v376, 15
        %v380 = vpop.permute.xlu0 %379
        %381 = vrot.lane.b32.xlu0 %v373, 15
        %v382 = vpop.permute.xlu0 %381
        %vm383 = vcmask 121856
        %v384 = vsel %vm383, %v378, %v380
        %v385 = vsel %vm383, %v380, %v382
        %v388 = vsel %vm176, %v384, 0.0
        %v389 = vsel %vm177, %v385, 0.0
        %s390 = scalar_lea.vmem %s1, 8
        %v391 = vld [vmem:[%s390] sm:$0xf]
        %v393 = vsel %vm212, %v391, 0
        %v396 = vsel %vm216, %v388, 0
        %v399 = vsel %vm216, %v389, 0
        %401 = vmatprep.subr.mxu0 0.0
        %402 = vmatpush1.msra.mxu0 0.0
        %403 = vmatprep.subr.mxu0 0.0
        %404 = vmatpush1.msra.mxu0 0.0
        %405 = vmatprep.subr.mxu0 0.0
        %406 = vmatpush1.msra.mxu0 0.0
        %407 = vmatprep.subr.mxu0 0.0
        %408 = vmatpush1.msra.mxu0 0.0
        %409 = vmatprep.subr.mxu0 0.0
        %410 = vmatpush1.msra.mxu0 0.0
        %411 = vmatprep.subr.mxu0 0.0
        %412 = vmatpush1.msra.mxu0 0.0
        %413 = vmatprep.subr.mxu0 0.0
        %414 = vmatpush1.msra.mxu0 0.0
        %415 = vmatprep.subr.mxu0 0.0
        %416 = vmatpush1.msra.mxu0 0.0
        %417 = vmatprep.subr.mxu0 0.0
        %418 = vmatpush1.msra.mxu0 0.0
        %419 = vmatprep.subr.mxu0 0.0
        %420 = vmatpush1.msra.mxu0 0.0
        %421 = vmatprep.subr.mxu0 0.0
        %422 = vmatpush1.msra.mxu0 0.0
        %423 = vmatprep.subr.mxu0 0.0
        %424 = vmatpush1.msra.mxu0 0.0
        %425 = vmatprep.subr.mxu0 0.0
        %426 = vmatpush1.msra.mxu0 0.0
        %427 = vmatprep.subr.mxu0 0.0
        %428 = vmatpush1.msra.mxu0 0.0
        %429 = vmatprep.subr.mxu0 0.0
        %430 = vmatpush1.msra.mxu0 0.0
        %431 = vmatprep.subr.mxu0 %v399
        %432 = vmatpush1.msra.mxu0 %v396
        %433 = vmatprep.subr.mxu0 0.0
        %434 = vmatpush2.msra.mxu0 0.0
        %435 = vmatprep.subr.mxu0 0.0
        %436 = vmatpush2.msra.mxu0 0.0
        %437 = vmatprep.subr.mxu0 0.0
        %438 = vmatpush2.msra.mxu0 0.0
        %439 = vmatprep.subr.mxu0 0.0
        %440 = vmatpush2.msra.mxu0 0.0
        %441 = vmatprep.subr.mxu0 0.0
        %442 = vmatpush2.msra.mxu0 0.0
        %443 = vmatprep.subr.mxu0 0.0
        %444 = vmatpush2.msra.mxu0 0.0
        %445 = vmatprep.subr.mxu0 0.0
        %446 = vmatpush2.msra.mxu0 0.0
        %447 = vmatprep.subr.mxu0 0.0
        %448 = vmatpush2.msra.mxu0 0.0
        %449 = vmatprep.subr.mxu0 0.0
        %450 = vmatpush2.msra.mxu0 0.0
        %451 = vmatprep.subr.mxu0 0.0
        %452 = vmatpush2.msra.mxu0 0.0
        %453 = vmatprep.subr.mxu0 0.0
        %454 = vmatpush2.msra.mxu0 0.0
        %455 = vmatprep.subr.mxu0 0.0
        %456 = vmatpush2.msra.mxu0 0.0
        %457 = vmatprep.subr.mxu0 0.0
        %458 = vmatpush2.msra.mxu0 0.0
        %459 = vmatprep.subr.mxu0 0.0
        %460 = vmatpush2.msra.mxu0 0.0
        %461 = vmatprep.subr.mxu0 0.0
        %462 = vmatpush2.msra.mxu0 0.0
        %463 = vmatprep.subr.mxu0 0.0
        %464 = vmatpush2.msra.mxu0 0.0
        %465 = vmatprep.mubr.f32.mxu0 0.0
        %466 = vmatmul.mubr.f32.gmra.mxu0 %v393
        %v467 = vpop.f32.mrf.mxu0
        %v468 = vadd.f32 0.0, %v467
        %v469 = vpop.f32.mrf.mxu0
        %v470 = vadd.f32 0.0, %v469
        %471 = vdwg.mxu0
        %v472 = vadd.f32 %v368, %v468
        %v473 = vadd.f32 %v370, %v470
        %v474 = vld [vmem:[#allocation2] sm:$0xff]
        %v475 = vld [vmem:[#allocation2 + $0x8] sm:$0xf]
        %v478 = vcombine.high %v474, %v474
        %479 = vrot.lane.b32.xlu0 %v474, 1
        %v480 = vpop.permute.xlu0 %479
        %481 = vrot.lane.b32.xlu0 %v478, 1
        %v482 = vpop.permute.xlu0 %481
        %483 = vrot.lane.b32.xlu0 %v475, 1
        %v484 = vpop.permute.xlu0 %483
        %vm485 = vcmask 7168
        %v486 = vsel %vm485, %v480, %v482
        %v487 = vsel %vm485, %v482, %v484
        %v490 = vsel %vm174, %v486, 0.0
        %v491 = vsel %vm175, %v487, 0.0
        %s492 = scalar_lea.vmem %s1, 12
        %v493 = vld [vmem:[%s492] sm:$0xf]
        %v495 = vsel %vm212, %v493, 0
        %v498 = vsel %vm216, %v490, 0
        %v501 = vsel %vm216, %v491, 0
        %503 = vmatprep.subr.mxu0 0.0
        %504 = vmatpush1.msra.mxu0 0.0
        %505 = vmatprep.subr.mxu0 0.0
        %506 = vmatpush1.msra.mxu0 0.0
        %507 = vmatprep.subr.mxu0 0.0
        %508 = vmatpush1.msra.mxu0 0.0
        %509 = vmatprep.subr.mxu0 0.0
        %510 = vmatpush1.msra.mxu0 0.0
        %511 = vmatprep.subr.mxu0 0.0
        %512 = vmatpush1.msra.mxu0 0.0
        %513 = vmatprep.subr.mxu0 0.0
        %514 = vmatpush1.msra.mxu0 0.0
        %515 = vmatprep.subr.mxu0 0.0
        %516 = vmatpush1.msra.mxu0 0.0
        %517 = vmatprep.subr.mxu0 0.0
        %518 = vmatpush1.msra.mxu0 0.0
        %519 = vmatprep.subr.mxu0 0.0
        %520 = vmatpush1.msra.mxu0 0.0
        %521 = vmatprep.subr.mxu0 0.0
        %522 = vmatpush1.msra.mxu0 0.0
        %523 = vmatprep.subr.mxu0 0.0
        %524 = vmatpush1.msra.mxu0 0.0
        %525 = vmatprep.subr.mxu0 0.0
        %526 = vmatpush1.msra.mxu0 0.0
        %527 = vmatprep.subr.mxu0 0.0
        %528 = vmatpush1.msra.mxu0 0.0
        %529 = vmatprep.subr.mxu0 0.0
        %530 = vmatpush1.msra.mxu0 0.0
        %531 = vmatprep.subr.mxu0 0.0
        %532 = vmatpush1.msra.mxu0 0.0
        %533 = vmatprep.subr.mxu0 %v501
        %534 = vmatpush1.msra.mxu0 %v498
        %535 = vmatprep.subr.mxu0 0.0
        %536 = vmatpush2.msra.mxu0 0.0
        %537 = vmatprep.subr.mxu0 0.0
        %538 = vmatpush2.msra.mxu0 0.0
        %539 = vmatprep.subr.mxu0 0.0
        %540 = vmatpush2.msra.mxu0 0.0
        %541 = vmatprep.subr.mxu0 0.0
        %542 = vmatpush2.msra.mxu0 0.0
        %543 = vmatprep.subr.mxu0 0.0
        %544 = vmatpush2.msra.mxu0 0.0
        %545 = vmatprep.subr.mxu0 0.0
        %546 = vmatpush2.msra.mxu0 0.0
        %547 = vmatprep.subr.mxu0 0.0
        %548 = vmatpush2.msra.mxu0 0.0
        %549 = vmatprep.subr.mxu0 0.0
        %550 = vmatpush2.msra.mxu0 0.0
        %551 = vmatprep.subr.mxu0 0.0
        %552 = vmatpush2.msra.mxu0 0.0
        %553 = vmatprep.subr.mxu0 0.0
        %554 = vmatpush2.msra.mxu0 0.0
        %555 = vmatprep.subr.mxu0 0.0
        %556 = vmatpush2.msra.mxu0 0.0
        %557 = vmatprep.subr.mxu0 0.0
        %558 = vmatpush2.msra.mxu0 0.0
        %559 = vmatprep.subr.mxu0 0.0
        %560 = vmatpush2.msra.mxu0 0.0
        %561 = vmatprep.subr.mxu0 0.0
        %562 = vmatpush2.msra.mxu0 0.0
        %563 = vmatprep.subr.mxu0 0.0
        %564 = vmatpush2.msra.mxu0 0.0
        %565 = vmatprep.subr.mxu0 0.0
        %566 = vmatpush2.msra.mxu0 0.0
        %567 = vmatprep.mubr.f32.mxu0 0.0
        %568 = vmatmul.mubr.f32.gmra.mxu0 %v495
        %v569 = vpop.f32.mrf.mxu0
        %v570 = vadd.f32 0.0, %v569
        %v571 = vpop.f32.mrf.mxu0
        %v572 = vadd.f32 0.0, %v571
        %573 = vdwg.mxu0
        %v574 = vadd.f32 %v472, %v570
        %v575 = vadd.f32 %v473, %v572
        %v576 = vld [vmem:[#allocation2 + $0x4] sm:$0xff]
        %s577 = scalar_lea.vmem %s1, 16
        %v578 = vld [vmem:[%s577] sm:$0xf]
        %v580 = vcombine.high %v576, %v576
        %v582 = vsel %vm212, %v578, 0
        %v584 = vsel %vm216, %v576, 0
        %v586 = vsel %vm216, %v580, 0
        %588 = vmatprep.subr.mxu0 0.0
        %589 = vmatpush1.msra.mxu0 0.0
        %590 = vmatprep.subr.mxu0 0.0
        %591 = vmatpush1.msra.mxu0 0.0
        %592 = vmatprep.subr.mxu0 0.0
        %593 = vmatpush1.msra.mxu0 0.0
        %594 = vmatprep.subr.mxu0 0.0
        %595 = vmatpush1.msra.mxu0 0.0
        %596 = vmatprep.subr.mxu0 0.0
        %597 = vmatpush1.msra.mxu0 0.0
        %598 = vmatprep.subr.mxu0 0.0
        %599 = vmatpush1.msra.mxu0 0.0
        %600 = vmatprep.subr.mxu0 0.0
        %601 = vmatpush1.msra.mxu0 0.0
        %602 = vmatprep.subr.mxu0 0.0
        %603 = vmatpush1.msra.mxu0 0.0
        %604 = vmatprep.subr.mxu0 0.0
        %605 = vmatpush1.msra.mxu0 0.0
        %606 = vmatprep.subr.mxu0 0.0
        %607 = vmatpush1.msra.mxu0 0.0
        %608 = vmatprep.subr.mxu0 0.0
        %609 = vmatpush1.msra.mxu0 0.0
        %610 = vmatprep.subr.mxu0 0.0
        %611 = vmatpush1.msra.mxu0 0.0
        %612 = vmatprep.subr.mxu0 0.0
        %613 = vmatpush1.msra.mxu0 0.0
        %614 = vmatprep.subr.mxu0 0.0
        %615 = vmatpush1.msra.mxu0 0.0
        %616 = vmatprep.subr.mxu0 0.0
        %617 = vmatpush1.msra.mxu0 0.0
        %618 = vmatprep.subr.mxu0 %v586
        %619 = vmatpush1.msra.mxu0 %v584
        %620 = vmatprep.subr.mxu0 0.0
        %621 = vmatpush2.msra.mxu0 0.0
        %622 = vmatprep.subr.mxu0 0.0
        %623 = vmatpush2.msra.mxu0 0.0
        %624 = vmatprep.subr.mxu0 0.0
        %625 = vmatpush2.msra.mxu0 0.0
        %626 = vmatprep.subr.mxu0 0.0
        %627 = vmatpush2.msra.mxu0 0.0
        %628 = vmatprep.subr.mxu0 0.0
        %629 = vmatpush2.msra.mxu0 0.0
        %630 = vmatprep.subr.mxu0 0.0
        %631 = vmatpush2.msra.mxu0 0.0
        %632 = vmatprep.subr.mxu0 0.0
        %633 = vmatpush2.msra.mxu0 0.0
        %634 = vmatprep.subr.mxu0 0.0
        %635 = vmatpush2.msra.mxu0 0.0
        %636 = vmatprep.subr.mxu0 0.0
        %637 = vmatpush2.msra.mxu0 0.0
        %638 = vmatprep.subr.mxu0 0.0
        %639 = vmatpush2.msra.mxu0 0.0
        %640 = vmatprep.subr.mxu0 0.0
        %641 = vmatpush2.msra.mxu0 0.0
        %642 = vmatprep.subr.mxu0 0.0
        %643 = vmatpush2.msra.mxu0 0.0
        %644 = vmatprep.subr.mxu0 0.0
        %645 = vmatpush2.msra.mxu0 0.0
        %646 = vmatprep.subr.mxu0 0.0
        %647 = vmatpush2.msra.mxu0 0.0
        %648 = vmatprep.subr.mxu0 0.0
        %649 = vmatpush2.msra.mxu0 0.0
        %650 = vmatprep.subr.mxu0 0.0
        %651 = vmatpush2.msra.mxu0 0.0
        %652 = vmatprep.mubr.f32.mxu0 0.0
        %653 = vmatmul.mubr.f32.gmra.mxu0 %v582
        %v654 = vpop.f32.mrf.mxu0
        %v655 = vadd.f32 0.0, %v654
        %v656 = vpop.f32.mrf.mxu0
        %v657 = vadd.f32 0.0, %v656
        %658 = vdwg.mxu0
        %v659 = vadd.f32 %v574, %v655
        %v660 = vadd.f32 %v575, %v657
        %v661 = vld [vmem:[#allocation2 + $0x4] sm:$0xff]
        %v662 = vld [vmem:[#allocation2 + $0xc] sm:$0xf]
        %v665 = vcombine.high %v661, %v661
        %666 = vrot.lane.b32.xlu0 %v661, 127
        %v667 = vpop.permute.xlu0 %666
        %668 = vrot.lane.b32.xlu0 %v665, 127
        %v669 = vpop.permute.xlu0 %668
        %670 = vrot.lane.b32.xlu0 %v662, 127
        %v671 = vpop.permute.xlu0 %670
        %vm672 = vcmask 1039360
        %v673 = vsel %vm672, %v667, %v669
        %v674 = vsel %vm672, %v669, %v671
        %v677 = vsel %vm176, %v673, 0.0
        %v678 = vsel %vm177, %v674, 0.0
        %s679 = scalar_lea.vmem %s1, 20
        %v680 = vld [vmem:[%s679] sm:$0xf]
        %v682 = vsel %vm212, %v680, 0
        %v685 = vsel %vm216, %v677, 0
        %v688 = vsel %vm216, %v678, 0
        %690 = vmatprep.subr.mxu0 0.0
        %691 = vmatpush1.msra.mxu0 0.0
        %692 = vmatprep.subr.mxu0 0.0
        %693 = vmatpush1.msra.mxu0 0.0
        %694 = vmatprep.subr.mxu0 0.0
        %695 = vmatpush1.msra.mxu0 0.0
        %696 = vmatprep.subr.mxu0 0.0
        %697 = vmatpush1.msra.mxu0 0.0
        %698 = vmatprep.subr.mxu0 0.0
        %699 = vmatpush1.msra.mxu0 0.0
        %700 = vmatprep.subr.mxu0 0.0
        %701 = vmatpush1.msra.mxu0 0.0
        %702 = vmatprep.subr.mxu0 0.0
        %703 = vmatpush1.msra.mxu0 0.0
        %704 = vmatprep.subr.mxu0 0.0
        %705 = vmatpush1.msra.mxu0 0.0
        %706 = vmatprep.subr.mxu0 0.0
        %707 = vmatpush1.msra.mxu0 0.0
        %708 = vmatprep.subr.mxu0 0.0
        %709 = vmatpush1.msra.mxu0 0.0
        %710 = vmatprep.subr.mxu0 0.0
        %711 = vmatpush1.msra.mxu0 0.0
        %712 = vmatprep.subr.mxu0 0.0
        %713 = vmatpush1.msra.mxu0 0.0
        %714 = vmatprep.subr.mxu0 0.0
        %715 = vmatpush1.msra.mxu0 0.0
        %716 = vmatprep.subr.mxu0 0.0
        %717 = vmatpush1.msra.mxu0 0.0
        %718 = vmatprep.subr.mxu0 0.0
        %719 = vmatpush1.msra.mxu0 0.0
        %720 = vmatprep.subr.mxu0 %v688
        %721 = vmatpush1.msra.mxu0 %v685
        %722 = vmatprep.subr.mxu0 0.0
        %723 = vmatpush2.msra.mxu0 0.0
        %724 = vmatprep.subr.mxu0 0.0
        %725 = vmatpush2.msra.mxu0 0.0
        %726 = vmatprep.subr.mxu0 0.0
        %727 = vmatpush2.msra.mxu0 0.0
        %728 = vmatprep.subr.mxu0 0.0
        %729 = vmatpush2.msra.mxu0 0.0
        %730 = vmatprep.subr.mxu0 0.0
        %731 = vmatpush2.msra.mxu0 0.0
        %732 = vmatprep.subr.mxu0 0.0
        %733 = vmatpush2.msra.mxu0 0.0
        %734 = vmatprep.subr.mxu0 0.0
        %735 = vmatpush2.msra.mxu0 0.0
        %736 = vmatprep.subr.mxu0 0.0
        %737 = vmatpush2.msra.mxu0 0.0
        %738 = vmatprep.subr.mxu0 0.0
        %739 = vmatpush2.msra.mxu0 0.0
        %740 = vmatprep.subr.mxu0 0.0
        %741 = vmatpush2.msra.mxu0 0.0
        %742 = vmatprep.subr.mxu0 0.0
        %743 = vmatpush2.msra.mxu0 0.0
        %744 = vmatprep.subr.mxu0 0.0
        %745 = vmatpush2.msra.mxu0 0.0
        %746 = vmatprep.subr.mxu0 0.0
        %747 = vmatpush2.msra.mxu0 0.0
        %748 = vmatprep.subr.mxu0 0.0
        %749 = vmatpush2.msra.mxu0 0.0
        %750 = vmatprep.subr.mxu0 0.0
        %751 = vmatpush2.msra.mxu0 0.0
        %752 = vmatprep.subr.mxu0 0.0
        %753 = vmatpush2.msra.mxu0 0.0
        %754 = vmatprep.mubr.f32.mxu0 0.0
        %755 = vmatmul.mubr.f32.gmra.mxu0 %v682
        %v756 = vpop.f32.mrf.mxu0
        %v757 = vadd.f32 0.0, %v756
        %v758 = vpop.f32.mrf.mxu0
        %v759 = vadd.f32 0.0, %v758
        %760 = vdwg.mxu0
        %v761 = vadd.f32 %v659, %v757
        %v762 = vadd.f32 %v660, %v759
        %v763 = vld [vmem:[#allocation2 + $0x4] sm:$0xff]
        %v764 = vld [vmem:[#allocation2 + $0xc] sm:$0xf]
        %v767 = vcombine.high %v763, %v763
        %768 = vrot.lane.b32.xlu0 %v763, 113
        %v769 = vpop.permute.xlu0 %768
        %770 = vrot.lane.b32.xlu0 %v767, 113
        %v771 = vpop.permute.xlu0 %770
        %772 = vrot.lane.b32.xlu0 %v764, 113
        %v773 = vpop.permute.xlu0 %772
        %vm774 = vcmask 924672
        %v775 = vsel %vm774, %v769, %v771
        %v776 = vsel %vm774, %v771, %v773
        %v779 = vsel %vm174, %v775, 0.0
        %v780 = vsel %vm175, %v776, 0.0
        %s781 = scalar_lea.vmem %s1, 24
        %v782 = vld [vmem:[%s781] sm:$0xf]
        %v784 = vsel %vm212, %v782, 0
        %v787 = vsel %vm216, %v779, 0
        %v790 = vsel %vm216, %v780, 0
        %792 = vmatprep.subr.mxu0 0.0
        %793 = vmatpush1.msra.mxu0 0.0
        %794 = vmatprep.subr.mxu0 0.0
        %795 = vmatpush1.msra.mxu0 0.0
        %796 = vmatprep.subr.mxu0 0.0
        %797 = vmatpush1.msra.mxu0 0.0
        %798 = vmatprep.subr.mxu0 0.0
        %799 = vmatpush1.msra.mxu0 0.0
        %800 = vmatprep.subr.mxu0 0.0
        %801 = vmatpush1.msra.mxu0 0.0
        %802 = vmatprep.subr.mxu0 0.0
        %803 = vmatpush1.msra.mxu0 0.0
        %804 = vmatprep.subr.mxu0 0.0
        %805 = vmatpush1.msra.mxu0 0.0
        %806 = vmatprep.subr.mxu0 0.0
        %807 = vmatpush1.msra.mxu0 0.0
        %808 = vmatprep.subr.mxu0 0.0
        %809 = vmatpush1.msra.mxu0 0.0
        %810 = vmatprep.subr.mxu0 0.0
        %811 = vmatpush1.msra.mxu0 0.0
        %812 = vmatprep.subr.mxu0 0.0
        %813 = vmatpush1.msra.mxu0 0.0
        %814 = vmatprep.subr.mxu0 0.0
        %815 = vmatpush1.msra.mxu0 0.0
        %816 = vmatprep.subr.mxu0 0.0
        %817 = vmatpush1.msra.mxu0 0.0
        %818 = vmatprep.subr.mxu0 0.0
        %819 = vmatpush1.msra.mxu0 0.0
        %820 = vmatprep.subr.mxu0 0.0
        %821 = vmatpush1.msra.mxu0 0.0
        %822 = vmatprep.subr.mxu0 %v790
        %823 = vmatpush1.msra.mxu0 %v787
        %824 = vmatprep.subr.mxu0 0.0
        %825 = vmatpush2.msra.mxu0 0.0
        %826 = vmatprep.subr.mxu0 0.0
        %827 = vmatpush2.msra.mxu0 0.0
        %828 = vmatprep.subr.mxu0 0.0
        %829 = vmatpush2.msra.mxu0 0.0
        %830 = vmatprep.subr.mxu0 0.0
        %831 = vmatpush2.msra.mxu0 0.0
        %832 = vmatprep.subr.mxu0 0.0
        %833 = vmatpush2.msra.mxu0 0.0
        %834 = vmatprep.subr.mxu0 0.0
        %835 = vmatpush2.msra.mxu0 0.0
        %836 = vmatprep.subr.mxu0 0.0
        %837 = vmatpush2.msra.mxu0 0.0
        %838 = vmatprep.subr.mxu0 0.0
        %839 = vmatpush2.msra.mxu0 0.0
        %840 = vmatprep.subr.mxu0 0.0
        %841 = vmatpush2.msra.mxu0 0.0
        %842 = vmatprep.subr.mxu0 0.0
        %843 = vmatpush2.msra.mxu0 0.0
        %844 = vmatprep.subr.mxu0 0.0
        %845 = vmatpush2.msra.mxu0 0.0
        %846 = vmatprep.subr.mxu0 0.0
        %847 = vmatpush2.msra.mxu0 0.0
        %848 = vmatprep.subr.mxu0 0.0
        %849 = vmatpush2.msra.mxu0 0.0
        %850 = vmatprep.subr.mxu0 0.0
        %851 = vmatpush2.msra.mxu0 0.0
        %852 = vmatprep.subr.mxu0 0.0
        %853 = vmatpush2.msra.mxu0 0.0
        %854 = vmatprep.subr.mxu0 0.0
        %855 = vmatpush2.msra.mxu0 0.0
        %856 = vmatprep.mubr.f32.mxu0 0.0
        %857 = vmatmul.mubr.f32.gmra.mxu0 %v784
        %v858 = vpop.f32.mrf.mxu0
        %v859 = vadd.f32 0.0, %v858
        %v860 = vpop.f32.mrf.mxu0
        %v861 = vadd.f32 0.0, %v860
        %862 = vdwg.mxu0
        %v863 = vadd.f32 %v761, %v859
        %v864 = vadd.f32 %v762, %v861
        %v865 = vld [vmem:[#allocation2 + $0x4] sm:$0xff]
        %v866 = vld [vmem:[#allocation2 + $0xc] sm:$0xf]
        %s867 = scalar_lea.vmem %s1, 28
        %v868 = vld [vmem:[%s867] sm:$0xf]
        %v871 = vcombine.high %v865, %v865
        %872 = vrot.lane.b32.xlu0 %v865, 112
        %v873 = vpop.permute.xlu0 %872
        %874 = vrot.lane.b32.xlu0 %v871, 112
        %v875 = vpop.permute.xlu0 %874
        %876 = vrot.lane.b32.xlu0 %v866, 112
        %v877 = vpop.permute.xlu0 %876
        %vm878 = vcmask 916480
        %v879 = vsel %vm878, %v873, %v875
        %v880 = vsel %vm878, %v875, %v877
        %v882 = vsel %vm212, %v868, 0
        %v884 = vsel %vm216, %v879, 0
        %v886 = vsel %vm216, %v880, 0
        %888 = vmatprep.subr.mxu0 0.0
        %889 = vmatpush1.msra.mxu0 0.0
        %890 = vmatprep.subr.mxu0 0.0
        %891 = vmatpush1.msra.mxu0 0.0
        %892 = vmatprep.subr.mxu0 0.0
        %893 = vmatpush1.msra.mxu0 0.0
        %894 = vmatprep.subr.mxu0 0.0
        %895 = vmatpush1.msra.mxu0 0.0
        %896 = vmatprep.subr.mxu0 0.0
        %897 = vmatpush1.msra.mxu0 0.0
        %898 = vmatprep.subr.mxu0 0.0
        %899 = vmatpush1.msra.mxu0 0.0
        %900 = vmatprep.subr.mxu0 0.0
        %901 = vmatpush1.msra.mxu0 0.0
        %902 = vmatprep.subr.mxu0 0.0
        %903 = vmatpush1.msra.mxu0 0.0
        %904 = vmatprep.subr.mxu0 0.0
        %905 = vmatpush1.msra.mxu0 0.0
        %906 = vmatprep.subr.mxu0 0.0
        %907 = vmatpush1.msra.mxu0 0.0
        %908 = vmatprep.subr.mxu0 0.0
        %909 = vmatpush1.msra.mxu0 0.0
        %910 = vmatprep.subr.mxu0 0.0
        %911 = vmatpush1.msra.mxu0 0.0
        %912 = vmatprep.subr.mxu0 0.0
        %913 = vmatpush1.msra.mxu0 0.0
        %914 = vmatprep.subr.mxu0 0.0
        %915 = vmatpush1.msra.mxu0 0.0
        %916 = vmatprep.subr.mxu0 0.0
        %917 = vmatpush1.msra.mxu0 0.0
        %918 = vmatprep.subr.mxu0 %v886
        %919 = vmatpush1.msra.mxu0 %v884
        %920 = vmatprep.subr.mxu0 0.0
        %921 = vmatpush2.msra.mxu0 0.0
        %922 = vmatprep.subr.mxu0 0.0
        %923 = vmatpush2.msra.mxu0 0.0
        %924 = vmatprep.subr.mxu0 0.0
        %925 = vmatpush2.msra.mxu0 0.0
        %926 = vmatprep.subr.mxu0 0.0
        %927 = vmatpush2.msra.mxu0 0.0
        %928 = vmatprep.subr.mxu0 0.0
        %929 = vmatpush2.msra.mxu0 0.0
        %930 = vmatprep.subr.mxu0 0.0
        %931 = vmatpush2.msra.mxu0 0.0
        %932 = vmatprep.subr.mxu0 0.0
        %933 = vmatpush2.msra.mxu0 0.0
        %934 = vmatprep.subr.mxu0 0.0
        %935 = vmatpush2.msra.mxu0 0.0
        %936 = vmatprep.subr.mxu0 0.0
        %937 = vmatpush2.msra.mxu0 0.0
        %938 = vmatprep.subr.mxu0 0.0
        %939 = vmatpush2.msra.mxu0 0.0
        %940 = vmatprep.subr.mxu0 0.0
        %941 = vmatpush2.msra.mxu0 0.0
        %942 = vmatprep.subr.mxu0 0.0
        %943 = vmatpush2.msra.mxu0 0.0
        %944 = vmatprep.subr.mxu0 0.0
        %945 = vmatpush2.msra.mxu0 0.0
        %946 = vmatprep.subr.mxu0 0.0
        %947 = vmatpush2.msra.mxu0 0.0
        %948 = vmatprep.subr.mxu0 0.0
        %949 = vmatpush2.msra.mxu0 0.0
        %950 = vmatprep.subr.mxu0 0.0
        %951 = vmatpush2.msra.mxu0 0.0
        %952 = vmatprep.mubr.f32.mxu0 0.0
        %953 = vmatmul.mubr.f32.gmra.mxu0 %v882
        %v954 = vpop.f32.mrf.mxu0
        %v955 = vadd.f32 0.0, %v954
        %v956 = vpop.f32.mrf.mxu0
        %v957 = vadd.f32 0.0, %v956
        %958 = vdwg.mxu0
        %v959 = vadd.f32 %v863, %v955
        %v960 = vadd.f32 %v864, %v957
        %v961 = vld [vmem:[#allocation2 + $0x4] sm:$0xff]
        %v962 = vld [vmem:[#allocation2 + $0xc] sm:$0xf]
        %v965 = vcombine.high %v961, %v961
        %966 = vrot.lane.b32.xlu0 %v961, 111
        %v967 = vpop.permute.xlu0 %966
        %968 = vrot.lane.b32.xlu0 %v965, 111
        %v969 = vpop.permute.xlu0 %968
        %970 = vrot.lane.b32.xlu0 %v962, 111
        %v971 = vpop.permute.xlu0 %970
        %vm972 = vcmask 908288
        %v973 = vsel %vm972, %v967, %v969
        %v974 = vsel %vm972, %v969, %v971
        %v977 = vsel %vm176, %v973, 0.0
        %v978 = vsel %vm177, %v974, 0.0
        %s979 = scalar_lea.vmem %s1, 32
        %v980 = vld [vmem:[%s979] sm:$0xf]
        %v982 = vsel %vm212, %v980, 0
        %v985 = vsel %vm216, %v977, 0
        %v988 = vsel %vm216, %v978, 0
        %990 = vmatprep.subr.mxu0 0.0
        %991 = vmatpush1.msra.mxu0 0.0
        %992 = vmatprep.subr.mxu0 0.0
        %993 = vmatpush1.msra.mxu0 0.0
        %994 = vmatprep.subr.mxu0 0.0
        %995 = vmatpush1.msra.mxu0 0.0
        %996 = vmatprep.subr.mxu0 0.0
        %997 = vmatpush1.msra.mxu0 0.0
        %998 = vmatprep.subr.mxu0 0.0
        %999 = vmatpush1.msra.mxu0 0.0
        %1000 = vmatprep.subr.mxu0 0.0
        %1001 = vmatpush1.msra.mxu0 0.0
        %1002 = vmatprep.subr.mxu0 0.0
        %1003 = vmatpush1.msra.mxu0 0.0
        %1004 = vmatprep.subr.mxu0 0.0
        %1005 = vmatpush1.msra.mxu0 0.0
        %1006 = vmatprep.subr.mxu0 0.0
        %1007 = vmatpush1.msra.mxu0 0.0
        %1008 = vmatprep.subr.mxu0 0.0
        %1009 = vmatpush1.msra.mxu0 0.0
        %1010 = vmatprep.subr.mxu0 0.0
        %1011 = vmatpush1.msra.mxu0 0.0
        %1012 = vmatprep.subr.mxu0 0.0
        %1013 = vmatpush1.msra.mxu0 0.0
        %1014 = vmatprep.subr.mxu0 0.0
        %1015 = vmatpush1.msra.mxu0 0.0
        %1016 = vmatprep.subr.mxu0 0.0
        %1017 = vmatpush1.msra.mxu0 0.0
        %1018 = vmatprep.subr.mxu0 0.0
        %1019 = vmatpush1.msra.mxu0 0.0
        %1020 = vmatprep.subr.mxu0 %v988
        %1021 = vmatpush1.msra.mxu0 %v985
        %1022 = vmatprep.subr.mxu0 0.0
        %1023 = vmatpush2.msra.mxu0 0.0
        %1024 = vmatprep.subr.mxu0 0.0
        %1025 = vmatpush2.msra.mxu0 0.0
        %1026 = vmatprep.subr.mxu0 0.0
        %1027 = vmatpush2.msra.mxu0 0.0
        %1028 = vmatprep.subr.mxu0 0.0
        %1029 = vmatpush2.msra.mxu0 0.0
        %1030 = vmatprep.subr.mxu0 0.0
        %1031 = vmatpush2.msra.mxu0 0.0
        %1032 = vmatprep.subr.mxu0 0.0
        %1033 = vmatpush2.msra.mxu0 0.0
        %1034 = vmatprep.subr.mxu0 0.0
        %1035 = vmatpush2.msra.mxu0 0.0
        %1036 = vmatprep.subr.mxu0 0.0
        %1037 = vmatpush2.msra.mxu0 0.0
        %1038 = vmatprep.subr.mxu0 0.0
        %1039 = vmatpush2.msra.mxu0 0.0
        %1040 = vmatprep.subr.mxu0 0.0
        %1041 = vmatpush2.msra.mxu0 0.0
        %1042 = vmatprep.subr.mxu0 0.0
        %1043 = vmatpush2.msra.mxu0 0.0
        %1044 = vmatprep.subr.mxu0 0.0
        %1045 = vmatpush2.msra.mxu0 0.0
        %1046 = vmatprep.subr.mxu0 0.0
        %1047 = vmatpush2.msra.mxu0 0.0
        %1048 = vmatprep.subr.mxu0 0.0
        %1049 = vmatpush2.msra.mxu0 0.0
        %1050 = vmatprep.subr.mxu0 0.0
        %1051 = vmatpush2.msra.mxu0 0.0
        %1052 = vmatprep.subr.mxu0 0.0
        %1053 = vmatpush2.msra.mxu0 0.0
        %1054 = vmatprep.mubr.f32.mxu0 0.0
        %1055 = vmatmul.mubr.f32.gmra.mxu0 %v982
        %v1056 = vpop.f32.mrf.mxu0
        %v1057 = vadd.f32 0.0, %v1056
        %v1058 = vpop.f32.mrf.mxu0
        %v1059 = vadd.f32 0.0, %v1058
        %1060 = vdwg.mxu0
        %v1061 = vadd.f32 %v959, %v1057
        %v1062 = vadd.f32 %v960, %v1059
        %v1063 = vsel %vm216, %v1061, 0.0
        %v1064 = vsel %vm216, %v1062, 0.0
        %v1065 = vadd.f32 %v1063, %v1064
        %1066 = vadd.xlane.f32.xlu0 %v1065
        %v1067 = vpop.xlane.xlu0 %1066
        %v1068 = vmul.f32 %v1067, 0.00390625
        %v1069 = vsub.f32 %v1061, %v1068
        %v1070 = vsub.f32 %v1062, %v1068
        %v1071 = vmul.f32 %v1069, %v1069
        %v1072 = vmul.f32 %v1070, %v1070
        %v1073 = vsel %vm216, %v1071, 0.0
        %v1074 = vsel %vm216, %v1072, 0.0
        %v1075 = vadd.f32 %v1073, %v1074
        %1076 = vadd.xlane.f32.xlu0 %v1075
        %v1077 = vpop.xlane.xlu0 %1076
        %v1078 = vmul.f32 %v1077, 0.00390625
        %v1079 = vadd.f32 %v1078, 1e-05
        %v1080 = vrsqrt.pop %v1079
        %v1081 = vmul.f32 %v1069, %v1080
        %v1082 = vmul.f32 %v1070, %v1080
        %v1083 = vmax.f32 %v1081, 0.0
        %v1084 = vmax.f32 %v1082, 0.0
        %v1087 = vcombine.low %v1083, %v1084
        %1089 = vst [vmem:[#allocation2 + $0x4] sm:$0xff] %v1087
        %v1090 = vld [vmem:[#allocation2] sm:$0xff]
        %v1091 = vld [vmem:[#allocation2 + $0x8] sm:$0xf]
        %v1094 = vcombine.high %v1090, %v1090
        %1095 = vrot.lane.b32.xlu0 %v1090, 17
        %v1096 = vpop.permute.xlu0 %1095
        %1097 = vrot.lane.b32.xlu0 %v1094, 17
        %v1098 = vpop.permute.xlu0 %1097
        %1099 = vrot.lane.b32.xlu0 %v1091, 17
        %v1100 = vpop.permute.xlu0 %1099
        %v1101 = vsel %vm193, %v1096, %v1098
        %v1102 = vsel %vm193, %v1098, %v1100
        %v1105 = vsel %vm174, %v1101, 0.0
        %v1106 = vsel %vm175, %v1102, 0.0
        %v1107 = vld [vmem:[%s2] sm:$0xf]
        %s1108 = scalar_lea.vmem %s2, 4
        %v1109 = vld [vmem:[%s1108] sm:$0xf]
        %1110 = vrot.lane.b32.xlu0 %v1090, 16
        %v1111 = vpop.permute.xlu0 %1110
        %1112 = vrot.lane.b32.xlu0 %v1094, 16
        %v1113 = vpop.permute.xlu0 %1112
        %1114 = vrot.lane.b32.xlu0 %v1091, 16
        %v1115 = vpop.permute.xlu0 %1114
        %v1116 = vsel %vm209, %v1111, %v1113
        %v1117 = vsel %vm209, %v1113, %v1115
        %v1119 = vsel %vm212, %v1109, 0
        %v1121 = vsel %vm216, %v1116, 0
        %v1123 = vsel %vm216, %v1117, 0
        %1125 = vmatprep.subr.mxu0 0.0
        %1126 = vmatpush1.msra.mxu0 0.0
        %1127 = vmatprep.subr.mxu0 0.0
        %1128 = vmatpush1.msra.mxu0 0.0
        %1129 = vmatprep.subr.mxu0 0.0
        %1130 = vmatpush1.msra.mxu0 0.0
        %1131 = vmatprep.subr.mxu0 0.0
        %1132 = vmatpush1.msra.mxu0 0.0
        %1133 = vmatprep.subr.mxu0 0.0
        %1134 = vmatpush1.msra.mxu0 0.0
        %1135 = vmatprep.subr.mxu0 0.0
        %1136 = vmatpush1.msra.mxu0 0.0
        %1137 = vmatprep.subr.mxu0 0.0
        %1138 = vmatpush1.msra.mxu0 0.0
        %1139 = vmatprep.subr.mxu0 0.0
        %1140 = vmatpush1.msra.mxu0 0.0
        %1141 = vmatprep.subr.mxu0 0.0
        %1142 = vmatpush1.msra.mxu0 0.0
        %1143 = vmatprep.subr.mxu0 0.0
        %1144 = vmatpush1.msra.mxu0 0.0
        %1145 = vmatprep.subr.mxu0 0.0
        %1146 = vmatpush1.msra.mxu0 0.0
        %1147 = vmatprep.subr.mxu0 0.0
        %1148 = vmatpush1.msra.mxu0 0.0
        %1149 = vmatprep.subr.mxu0 0.0
        %1150 = vmatpush1.msra.mxu0 0.0
        %1151 = vmatprep.subr.mxu0 0.0
        %1152 = vmatpush1.msra.mxu0 0.0
        %1153 = vmatprep.subr.mxu0 0.0
        %1154 = vmatpush1.msra.mxu0 0.0
        %1155 = vmatprep.subr.mxu0 %v1123
        %1156 = vmatpush1.msra.mxu0 %v1121
        %1157 = vmatprep.subr.mxu0 0.0
        %1158 = vmatpush2.msra.mxu0 0.0
        %1159 = vmatprep.subr.mxu0 0.0
        %1160 = vmatpush2.msra.mxu0 0.0
        %1161 = vmatprep.subr.mxu0 0.0
        %1162 = vmatpush2.msra.mxu0 0.0
        %1163 = vmatprep.subr.mxu0 0.0
        %1164 = vmatpush2.msra.mxu0 0.0
        %1165 = vmatprep.subr.mxu0 0.0
        %1166 = vmatpush2.msra.mxu0 0.0
        %1167 = vmatprep.subr.mxu0 0.0
        %1168 = vmatpush2.msra.mxu0 0.0
        %1169 = vmatprep.subr.mxu0 0.0
        %1170 = vmatpush2.msra.mxu0 0.0
        %1171 = vmatprep.subr.mxu0 0.0
        %1172 = vmatpush2.msra.mxu0 0.0
        %1173 = vmatprep.subr.mxu0 0.0
        %1174 = vmatpush2.msra.mxu0 0.0
        %1175 = vmatprep.subr.mxu0 0.0
        %1176 = vmatpush2.msra.mxu0 0.0
        %1177 = vmatprep.subr.mxu0 0.0
        %1178 = vmatpush2.msra.mxu0 0.0
        %1179 = vmatprep.subr.mxu0 0.0
        %1180 = vmatpush2.msra.mxu0 0.0
        %1181 = vmatprep.subr.mxu0 0.0
        %1182 = vmatpush2.msra.mxu0 0.0
        %1183 = vmatprep.subr.mxu0 0.0
        %1184 = vmatpush2.msra.mxu0 0.0
        %1185 = vmatprep.subr.mxu0 0.0
        %1186 = vmatpush2.msra.mxu0 0.0
        %1187 = vmatprep.subr.mxu0 0.0
        %1188 = vmatpush2.msra.mxu0 0.0
        %1189 = vmatprep.mubr.f32.mxu0 0.0
        %1190 = vmatmul.mubr.f32.gmra.mxu0 %v1119
        %v1191 = vpop.f32.mrf.mxu0
        %v1192 = vadd.f32 0.0, %v1191
        %v1193 = vpop.f32.mrf.mxu0
        %v1194 = vadd.f32 0.0, %v1193
        %1195 = vdwg.mxu0
        %v1197 = vsel %vm212, %v1107, 0
        %v1200 = vsel %vm216, %v1105, 0
        %v1203 = vsel %vm216, %v1106, 0
        %1205 = vmatprep.subr.mxu0 0.0
        %1206 = vmatpush1.msra.mxu0 0.0
        %1207 = vmatprep.subr.mxu0 0.0
        %1208 = vmatpush1.msra.mxu0 0.0
        %1209 = vmatprep.subr.mxu0 0.0
        %1210 = vmatpush1.msra.mxu0 0.0
        %1211 = vmatprep.subr.mxu0 0.0
        %1212 = vmatpush1.msra.mxu0 0.0
        %1213 = vmatprep.subr.mxu0 0.0
        %1214 = vmatpush1.msra.mxu0 0.0
        %1215 = vmatprep.subr.mxu0 0.0
        %1216 = vmatpush1.msra.mxu0 0.0
        %1217 = vmatprep.subr.mxu0 0.0
        %1218 = vmatpush1.msra.mxu0 0.0
        %1219 = vmatprep.subr.mxu0 0.0
        %1220 = vmatpush1.msra.mxu0 0.0
        %1221 = vmatprep.subr.mxu0 0.0
        %1222 = vmatpush1.msra.mxu0 0.0
        %1223 = vmatprep.subr.mxu0 0.0
        %1224 = vmatpush1.msra.mxu0 0.0
        %1225 = vmatprep.subr.mxu0 0.0
        %1226 = vmatpush1.msra.mxu0 0.0
        %1227 = vmatprep.subr.mxu0 0.0
        %1228 = vmatpush1.msra.mxu0 0.0
        %1229 = vmatprep.subr.mxu0 0.0
        %1230 = vmatpush1.msra.mxu0 0.0
        %1231 = vmatprep.subr.mxu0 0.0
        %1232 = vmatpush1.msra.mxu0 0.0
        %1233 = vmatprep.subr.mxu0 0.0
        %1234 = vmatpush1.msra.mxu0 0.0
        %1235 = vmatprep.subr.mxu0 %v1203
        %1236 = vmatpush1.msra.mxu0 %v1200
        %1237 = vmatprep.subr.mxu0 0.0
        %1238 = vmatpush2.msra.mxu0 0.0
        %1239 = vmatprep.subr.mxu0 0.0
        %1240 = vmatpush2.msra.mxu0 0.0
        %1241 = vmatprep.subr.mxu0 0.0
        %1242 = vmatpush2.msra.mxu0 0.0
        %1243 = vmatprep.subr.mxu0 0.0
        %1244 = vmatpush2.msra.mxu0 0.0
        %1245 = vmatprep.subr.mxu0 0.0
        %1246 = vmatpush2.msra.mxu0 0.0
        %1247 = vmatprep.subr.mxu0 0.0
        %1248 = vmatpush2.msra.mxu0 0.0
        %1249 = vmatprep.subr.mxu0 0.0
        %1250 = vmatpush2.msra.mxu0 0.0
        %1251 = vmatprep.subr.mxu0 0.0
        %1252 = vmatpush2.msra.mxu0 0.0
        %1253 = vmatprep.subr.mxu0 0.0
        %1254 = vmatpush2.msra.mxu0 0.0
        %1255 = vmatprep.subr.mxu0 0.0
        %1256 = vmatpush2.msra.mxu0 0.0
        %1257 = vmatprep.subr.mxu0 0.0
        %1258 = vmatpush2.msra.mxu0 0.0
        %1259 = vmatprep.subr.mxu0 0.0
        %1260 = vmatpush2.msra.mxu0 0.0
        %1261 = vmatprep.subr.mxu0 0.0
        %1262 = vmatpush2.msra.mxu0 0.0
        %1263 = vmatprep.subr.mxu0 0.0
        %1264 = vmatpush2.msra.mxu0 0.0
        %1265 = vmatprep.subr.mxu0 0.0
        %1266 = vmatpush2.msra.mxu0 0.0
        %1267 = vmatprep.subr.mxu0 0.0
        %1268 = vmatpush2.msra.mxu0 0.0
        %1269 = vmatprep.mubr.f32.mxu0 0.0
        %1270 = vmatmul.mubr.f32.gmra.mxu0 %v1197
        %v1271 = vpop.f32.mrf.mxu0
        %v1272 = vadd.f32 %v1192, %v1271
        %v1273 = vpop.f32.mrf.mxu0
        %v1274 = vadd.f32 %v1194, %v1273
        %1275 = vdwg.mxu0
        %v1276 = vld [vmem:[#allocation2] sm:$0xff]
        %v1277 = vld [vmem:[#allocation2 + $0x8] sm:$0xf]
        %v1280 = vcombine.high %v1276, %v1276
        %1281 = vrot.lane.b32.xlu0 %v1276, 15
        %v1282 = vpop.permute.xlu0 %1281
        %1283 = vrot.lane.b32.xlu0 %v1280, 15
        %v1284 = vpop.permute.xlu0 %1283
        %1285 = vrot.lane.b32.xlu0 %v1277, 15
        %v1286 = vpop.permute.xlu0 %1285
        %v1287 = vsel %vm383, %v1282, %v1284
        %v1288 = vsel %vm383, %v1284, %v1286
        %v1291 = vsel %vm176, %v1287, 0.0
        %v1292 = vsel %vm177, %v1288, 0.0
        %s1293 = scalar_lea.vmem %s2, 8
        %v1294 = vld [vmem:[%s1293] sm:$0xf]
        %v1296 = vsel %vm212, %v1294, 0
        %v1299 = vsel %vm216, %v1291, 0
        %v1302 = vsel %vm216, %v1292, 0
        %1304 = vmatprep.subr.mxu0 0.0
        %1305 = vmatpush1.msra.mxu0 0.0
        %1306 = vmatprep.subr.mxu0 0.0
        %1307 = vmatpush1.msra.mxu0 0.0
        %1308 = vmatprep.subr.mxu0 0.0
        %1309 = vmatpush1.msra.mxu0 0.0
        %1310 = vmatprep.subr.mxu0 0.0
        %1311 = vmatpush1.msra.mxu0 0.0
        %1312 = vmatprep.subr.mxu0 0.0
        %1313 = vmatpush1.msra.mxu0 0.0
        %1314 = vmatprep.subr.mxu0 0.0
        %1315 = vmatpush1.msra.mxu0 0.0
        %1316 = vmatprep.subr.mxu0 0.0
        %1317 = vmatpush1.msra.mxu0 0.0
        %1318 = vmatprep.subr.mxu0 0.0
        %1319 = vmatpush1.msra.mxu0 0.0
        %1320 = vmatprep.subr.mxu0 0.0
        %1321 = vmatpush1.msra.mxu0 0.0
        %1322 = vmatprep.subr.mxu0 0.0
        %1323 = vmatpush1.msra.mxu0 0.0
        %1324 = vmatprep.subr.mxu0 0.0
        %1325 = vmatpush1.msra.mxu0 0.0
        %1326 = vmatprep.subr.mxu0 0.0
        %1327 = vmatpush1.msra.mxu0 0.0
        %1328 = vmatprep.subr.mxu0 0.0
        %1329 = vmatpush1.msra.mxu0 0.0
        %1330 = vmatprep.subr.mxu0 0.0
        %1331 = vmatpush1.msra.mxu0 0.0
        %1332 = vmatprep.subr.mxu0 0.0
        %1333 = vmatpush1.msra.mxu0 0.0
        %1334 = vmatprep.subr.mxu0 %v1302
        %1335 = vmatpush1.msra.mxu0 %v1299
        %1336 = vmatprep.subr.mxu0 0.0
        %1337 = vmatpush2.msra.mxu0 0.0
        %1338 = vmatprep.subr.mxu0 0.0
        %1339 = vmatpush2.msra.mxu0 0.0
        %1340 = vmatprep.subr.mxu0 0.0
        %1341 = vmatpush2.msra.mxu0 0.0
        %1342 = vmatprep.subr.mxu0 0.0
        %1343 = vmatpush2.msra.mxu0 0.0
        %1344 = vmatprep.subr.mxu0 0.0
        %1345 = vmatpush2.msra.mxu0 0.0
        %1346 = vmatprep.subr.mxu0 0.0
        %1347 = vmatpush2.msra.mxu0 0.0
        %1348 = vmatprep.subr.mxu0 0.0
        %1349 = vmatpush2.msra.mxu0 0.0
        %1350 = vmatprep.subr.mxu0 0.0
        %1351 = vmatpush2.msra.mxu0 0.0
        %1352 = vmatprep.subr.mxu0 0.0
        %1353 = vmatpush2.msra.mxu0 0.0
        %1354 = vmatprep.subr.mxu0 0.0
        %1355 = vmatpush2.msra.mxu0 0.0
        %1356 = vmatprep.subr.mxu0 0.0
        %1357 = vmatpush2.msra.mxu0 0.0
        %1358 = vmatprep.subr.mxu0 0.0
        %1359 = vmatpush2.msra.mxu0 0.0
        %1360 = vmatprep.subr.mxu0 0.0
        %1361 = vmatpush2.msra.mxu0 0.0
        %1362 = vmatprep.subr.mxu0 0.0
        %1363 = vmatpush2.msra.mxu0 0.0
        %1364 = vmatprep.subr.mxu0 0.0
        %1365 = vmatpush2.msra.mxu0 0.0
        %1366 = vmatprep.subr.mxu0 0.0
        %1367 = vmatpush2.msra.mxu0 0.0
        %1368 = vmatprep.mubr.f32.mxu0 0.0
        %1369 = vmatmul.mubr.f32.gmra.mxu0 %v1296
        %v1370 = vpop.f32.mrf.mxu0
        %v1371 = vadd.f32 0.0, %v1370
        %v1372 = vpop.f32.mrf.mxu0
        %v1373 = vadd.f32 0.0, %v1372
        %1374 = vdwg.mxu0
        %v1375 = vadd.f32 %v1272, %v1371
        %v1376 = vadd.f32 %v1274, %v1373
        %v1377 = vld [vmem:[#allocation2] sm:$0xff]
        %v1378 = vld [vmem:[#allocation2 + $0x8] sm:$0xf]
        %v1381 = vcombine.high %v1377, %v1377
        %1382 = vrot.lane.b32.xlu0 %v1377, 1
        %v1383 = vpop.permute.xlu0 %1382
        %1384 = vrot.lane.b32.xlu0 %v1381, 1
        %v1385 = vpop.permute.xlu0 %1384
        %1386 = vrot.lane.b32.xlu0 %v1378, 1
        %v1387 = vpop.permute.xlu0 %1386
        %v1388 = vsel %vm485, %v1383, %v1385
        %v1389 = vsel %vm485, %v1385, %v1387
        %v1392 = vsel %vm174, %v1388, 0.0
        %v1393 = vsel %vm175, %v1389, 0.0
        %s1394 = scalar_lea.vmem %s2, 12
        %v1395 = vld [vmem:[%s1394] sm:$0xf]
        %v1397 = vsel %vm212, %v1395, 0
        %v1400 = vsel %vm216, %v1392, 0
        %v1403 = vsel %vm216, %v1393, 0
        %1405 = vmatprep.subr.mxu0 0.0
        %1406 = vmatpush1.msra.mxu0 0.0
        %1407 = vmatprep.subr.mxu0 0.0
        %1408 = vmatpush1.msra.mxu0 0.0
        %1409 = vmatprep.subr.mxu0 0.0
        %1410 = vmatpush1.msra.mxu0 0.0
        %1411 = vmatprep.subr.mxu0 0.0
        %1412 = vmatpush1.msra.mxu0 0.0
        %1413 = vmatprep.subr.mxu0 0.0
        %1414 = vmatpush1.msra.mxu0 0.0
        %1415 = vmatprep.subr.mxu0 0.0
        %1416 = vmatpush1.msra.mxu0 0.0
        %1417 = vmatprep.subr.mxu0 0.0
        %1418 = vmatpush1.msra.mxu0 0.0
        %1419 = vmatprep.subr.mxu0 0.0
        %1420 = vmatpush1.msra.mxu0 0.0
        %1421 = vmatprep.subr.mxu0 0.0
        %1422 = vmatpush1.msra.mxu0 0.0
        %1423 = vmatprep.subr.mxu0 0.0
        %1424 = vmatpush1.msra.mxu0 0.0
        %1425 = vmatprep.subr.mxu0 0.0
        %1426 = vmatpush1.msra.mxu0 0.0
        %1427 = vmatprep.subr.mxu0 0.0
        %1428 = vmatpush1.msra.mxu0 0.0
        %1429 = vmatprep.subr.mxu0 0.0
        %1430 = vmatpush1.msra.mxu0 0.0
        %1431 = vmatprep.subr.mxu0 0.0
        %1432 = vmatpush1.msra.mxu0 0.0
        %1433 = vmatprep.subr.mxu0 0.0
        %1434 = vmatpush1.msra.mxu0 0.0
        %1435 = vmatprep.subr.mxu0 %v1403
        %1436 = vmatpush1.msra.mxu0 %v1400
        %1437 = vmatprep.subr.mxu0 0.0
        %1438 = vmatpush2.msra.mxu0 0.0
        %1439 = vmatprep.subr.mxu0 0.0
        %1440 = vmatpush2.msra.mxu0 0.0
        %1441 = vmatprep.subr.mxu0 0.0
        %1442 = vmatpush2.msra.mxu0 0.0
        %1443 = vmatprep.subr.mxu0 0.0
        %1444 = vmatpush2.msra.mxu0 0.0
        %1445 = vmatprep.subr.mxu0 0.0
        %1446 = vmatpush2.msra.mxu0 0.0
        %1447 = vmatprep.subr.mxu0 0.0
        %1448 = vmatpush2.msra.mxu0 0.0
        %1449 = vmatprep.subr.mxu0 0.0
        %1450 = vmatpush2.msra.mxu0 0.0
        %1451 = vmatprep.subr.mxu0 0.0
        %1452 = vmatpush2.msra.mxu0 0.0
        %1453 = vmatprep.subr.mxu0 0.0
        %1454 = vmatpush2.msra.mxu0 0.0
        %1455 = vmatprep.subr.mxu0 0.0
        %1456 = vmatpush2.msra.mxu0 0.0
        %1457 = vmatprep.subr.mxu0 0.0
        %1458 = vmatpush2.msra.mxu0 0.0
        %1459 = vmatprep.subr.mxu0 0.0
        %1460 = vmatpush2.msra.mxu0 0.0
        %1461 = vmatprep.subr.mxu0 0.0
        %1462 = vmatpush2.msra.mxu0 0.0
        %1463 = vmatprep.subr.mxu0 0.0
        %1464 = vmatpush2.msra.mxu0 0.0
        %1465 = vmatprep.subr.mxu0 0.0
        %1466 = vmatpush2.msra.mxu0 0.0
        %1467 = vmatprep.subr.mxu0 0.0
        %1468 = vmatpush2.msra.mxu0 0.0
        %1469 = vmatprep.mubr.f32.mxu0 0.0
        %1470 = vmatmul.mubr.f32.gmra.mxu0 %v1397
        %v1471 = vpop.f32.mrf.mxu0
        %v1472 = vadd.f32 0.0, %v1471
        %v1473 = vpop.f32.mrf.mxu0
        %v1474 = vadd.f32 0.0, %v1473
        %1475 = vdwg.mxu0
        %v1476 = vadd.f32 %v1375, %v1472
        %v1477 = vadd.f32 %v1376, %v1474
        %v1478 = vld [vmem:[#allocation2 + $0x4] sm:$0xff]
        %s1479 = scalar_lea.vmem %s2, 16
        %v1480 = vld [vmem:[%s1479] sm:$0xf]
        %v1482 = vcombine.high %v1478, %v1478
        %v1484 = vsel %vm212, %v1480, 0
        %v1486 = vsel %vm216, %v1478, 0
        %v1488 = vsel %vm216, %v1482, 0
        %1490 = vmatprep.subr.mxu0 0.0
        %1491 = vmatpush1.msra.mxu0 0.0
        %1492 = vmatprep.subr.mxu0 0.0
        %1493 = vmatpush1.msra.mxu0 0.0
        %1494 = vmatprep.subr.mxu0 0.0
        %1495 = vmatpush1.msra.mxu0 0.0
        %1496 = vmatprep.subr.mxu0 0.0
        %1497 = vmatpush1.msra.mxu0 0.0
        %1498 = vmatprep.subr.mxu0 0.0
        %1499 = vmatpush1.msra.mxu0 0.0
        %1500 = vmatprep.subr.mxu0 0.0
        %1501 = vmatpush1.msra.mxu0 0.0
        %1502 = vmatprep.subr.mxu0 0.0
        %1503 = vmatpush1.msra.mxu0 0.0
        %1504 = vmatprep.subr.mxu0 0.0
        %1505 = vmatpush1.msra.mxu0 0.0
        %1506 = vmatprep.subr.mxu0 0.0
        %1507 = vmatpush1.msra.mxu0 0.0
        %1508 = vmatprep.subr.mxu0 0.0
        %1509 = vmatpush1.msra.mxu0 0.0
        %1510 = vmatprep.subr.mxu0 0.0
        %1511 = vmatpush1.msra.mxu0 0.0
        %1512 = vmatprep.subr.mxu0 0.0
        %1513 = vmatpush1.msra.mxu0 0.0
        %1514 = vmatprep.subr.mxu0 0.0
        %1515 = vmatpush1.msra.mxu0 0.0
        %1516 = vmatprep.subr.mxu0 0.0
        %1517 = vmatpush1.msra.mxu0 0.0
        %1518 = vmatprep.subr.mxu0 0.0
        %1519 = vmatpush1.msra.mxu0 0.0
        %1520 = vmatprep.subr.mxu0 %v1488
        %1521 = vmatpush1.msra.mxu0 %v1486
        %1522 = vmatprep.subr.mxu0 0.0
        %1523 = vmatpush2.msra.mxu0 0.0
        %1524 = vmatprep.subr.mxu0 0.0
        %1525 = vmatpush2.msra.mxu0 0.0
        %1526 = vmatprep.subr.mxu0 0.0
        %1527 = vmatpush2.msra.mxu0 0.0
        %1528 = vmatprep.subr.mxu0 0.0
        %1529 = vmatpush2.msra.mxu0 0.0
        %1530 = vmatprep.subr.mxu0 0.0
        %1531 = vmatpush2.msra.mxu0 0.0
        %1532 = vmatprep.subr.mxu0 0.0
        %1533 = vmatpush2.msra.mxu0 0.0
        %1534 = vmatprep.subr.mxu0 0.0
        %1535 = vmatpush2.msra.mxu0 0.0
        %1536 = vmatprep.subr.mxu0 0.0
        %1537 = vmatpush2.msra.mxu0 0.0
        %1538 = vmatprep.subr.mxu0 0.0
        %1539 = vmatpush2.msra.mxu0 0.0
        %1540 = vmatprep.subr.mxu0 0.0
        %1541 = vmatpush2.msra.mxu0 0.0
        %1542 = vmatprep.subr.mxu0 0.0
        %1543 = vmatpush2.msra.mxu0 0.0
        %1544 = vmatprep.subr.mxu0 0.0
        %1545 = vmatpush2.msra.mxu0 0.0
        %1546 = vmatprep.subr.mxu0 0.0
        %1547 = vmatpush2.msra.mxu0 0.0
        %1548 = vmatprep.subr.mxu0 0.0
        %1549 = vmatpush2.msra.mxu0 0.0
        %1550 = vmatprep.subr.mxu0 0.0
        %1551 = vmatpush2.msra.mxu0 0.0
        %1552 = vmatprep.subr.mxu0 0.0
        %1553 = vmatpush2.msra.mxu0 0.0
        %1554 = vmatprep.mubr.f32.mxu0 0.0
        %1555 = vmatmul.mubr.f32.gmra.mxu0 %v1484
        %v1556 = vpop.f32.mrf.mxu0
        %v1557 = vadd.f32 0.0, %v1556
        %v1558 = vpop.f32.mrf.mxu0
        %v1559 = vadd.f32 0.0, %v1558
        %1560 = vdwg.mxu0
        %v1561 = vadd.f32 %v1476, %v1557
        %v1562 = vadd.f32 %v1477, %v1559
        %v1563 = vld [vmem:[#allocation2 + $0x4] sm:$0xff]
        %v1564 = vld [vmem:[#allocation2 + $0xc] sm:$0xf]
        %v1567 = vcombine.high %v1563, %v1563
        %1568 = vrot.lane.b32.xlu0 %v1563, 127
        %v1569 = vpop.permute.xlu0 %1568
        %1570 = vrot.lane.b32.xlu0 %v1567, 127
        %v1571 = vpop.permute.xlu0 %1570
        %1572 = vrot.lane.b32.xlu0 %v1564, 127
        %v1573 = vpop.permute.xlu0 %1572
        %v1574 = vsel %vm672, %v1569, %v1571
        %v1575 = vsel %vm672, %v1571, %v1573
        %v1578 = vsel %vm176, %v1574, 0.0
        %v1579 = vsel %vm177, %v1575, 0.0
        %s1580 = scalar_lea.vmem %s2, 20
        %v1581 = vld [vmem:[%s1580] sm:$0xf]
        %v1583 = vsel %vm212, %v1581, 0
        %v1586 = vsel %vm216, %v1578, 0
        %v1589 = vsel %vm216, %v1579, 0
        %1591 = vmatprep.subr.mxu0 0.0
        %1592 = vmatpush1.msra.mxu0 0.0
        %1593 = vmatprep.subr.mxu0 0.0
        %1594 = vmatpush1.msra.mxu0 0.0
        %1595 = vmatprep.subr.mxu0 0.0
        %1596 = vmatpush1.msra.mxu0 0.0
        %1597 = vmatprep.subr.mxu0 0.0
        %1598 = vmatpush1.msra.mxu0 0.0
        %1599 = vmatprep.subr.mxu0 0.0
        %1600 = vmatpush1.msra.mxu0 0.0
        %1601 = vmatprep.subr.mxu0 0.0
        %1602 = vmatpush1.msra.mxu0 0.0
        %1603 = vmatprep.subr.mxu0 0.0
        %1604 = vmatpush1.msra.mxu0 0.0
        %1605 = vmatprep.subr.mxu0 0.0
        %1606 = vmatpush1.msra.mxu0 0.0
        %1607 = vmatprep.subr.mxu0 0.0
        %1608 = vmatpush1.msra.mxu0 0.0
        %1609 = vmatprep.subr.mxu0 0.0
        %1610 = vmatpush1.msra.mxu0 0.0
        %1611 = vmatprep.subr.mxu0 0.0
        %1612 = vmatpush1.msra.mxu0 0.0
        %1613 = vmatprep.subr.mxu0 0.0
        %1614 = vmatpush1.msra.mxu0 0.0
        %1615 = vmatprep.subr.mxu0 0.0
        %1616 = vmatpush1.msra.mxu0 0.0
        %1617 = vmatprep.subr.mxu0 0.0
        %1618 = vmatpush1.msra.mxu0 0.0
        %1619 = vmatprep.subr.mxu0 0.0
        %1620 = vmatpush1.msra.mxu0 0.0
        %1621 = vmatprep.subr.mxu0 %v1589
        %1622 = vmatpush1.msra.mxu0 %v1586
        %1623 = vmatprep.subr.mxu0 0.0
        %1624 = vmatpush2.msra.mxu0 0.0
        %1625 = vmatprep.subr.mxu0 0.0
        %1626 = vmatpush2.msra.mxu0 0.0
        %1627 = vmatprep.subr.mxu0 0.0
        %1628 = vmatpush2.msra.mxu0 0.0
        %1629 = vmatprep.subr.mxu0 0.0
        %1630 = vmatpush2.msra.mxu0 0.0
        %1631 = vmatprep.subr.mxu0 0.0
        %1632 = vmatpush2.msra.mxu0 0.0
        %1633 = vmatprep.subr.mxu0 0.0
        %1634 = vmatpush2.msra.mxu0 0.0
        %1635 = vmatprep.subr.mxu0 0.0
        %1636 = vmatpush2.msra.mxu0 0.0
        %1637 = vmatprep.subr.mxu0 0.0
        %1638 = vmatpush2.msra.mxu0 0.0
        %1639 = vmatprep.subr.mxu0 0.0
        %1640 = vmatpush2.msra.mxu0 0.0
        %1641 = vmatprep.subr.mxu0 0.0
        %1642 = vmatpush2.msra.mxu0 0.0
        %1643 = vmatprep.subr.mxu0 0.0
        %1644 = vmatpush2.msra.mxu0 0.0
        %1645 = vmatprep.subr.mxu0 0.0
        %1646 = vmatpush2.msra.mxu0 0.0
        %1647 = vmatprep.subr.mxu0 0.0
        %1648 = vmatpush2.msra.mxu0 0.0
        %1649 = vmatprep.subr.mxu0 0.0
        %1650 = vmatpush2.msra.mxu0 0.0
        %1651 = vmatprep.subr.mxu0 0.0
        %1652 = vmatpush2.msra.mxu0 0.0
        %1653 = vmatprep.subr.mxu0 0.0
        %1654 = vmatpush2.msra.mxu0 0.0
        %1655 = vmatprep.mubr.f32.mxu0 0.0
        %1656 = vmatmul.mubr.f32.gmra.mxu0 %v1583
        %v1657 = vpop.f32.mrf.mxu0
        %v1658 = vadd.f32 0.0, %v1657
        %v1659 = vpop.f32.mrf.mxu0
        %v1660 = vadd.f32 0.0, %v1659
        %1661 = vdwg.mxu0
        %v1662 = vadd.f32 %v1561, %v1658
        %v1663 = vadd.f32 %v1562, %v1660
        %v1664 = vld [vmem:[#allocation2 + $0x4] sm:$0xff]
        %v1665 = vld [vmem:[#allocation2 + $0xc] sm:$0xf]
        %v1668 = vcombine.high %v1664, %v1664
        %1669 = vrot.lane.b32.xlu0 %v1664, 113
        %v1670 = vpop.permute.xlu0 %1669
        %1671 = vrot.lane.b32.xlu0 %v1668, 113
        %v1672 = vpop.permute.xlu0 %1671
        %1673 = vrot.lane.b32.xlu0 %v1665, 113
        %v1674 = vpop.permute.xlu0 %1673
        %v1675 = vsel %vm774, %v1670, %v1672
        %v1676 = vsel %vm774, %v1672, %v1674
        %v1679 = vsel %vm174, %v1675, 0.0
        %v1680 = vsel %vm175, %v1676, 0.0
        %s1681 = scalar_lea.vmem %s2, 24
        %v1682 = vld [vmem:[%s1681] sm:$0xf]
        %v1684 = vsel %vm212, %v1682, 0
        %v1687 = vsel %vm216, %v1679, 0
        %v1690 = vsel %vm216, %v1680, 0
        %1692 = vmatprep.subr.mxu0 0.0
        %1693 = vmatpush1.msra.mxu0 0.0
        %1694 = vmatprep.subr.mxu0 0.0
        %1695 = vmatpush1.msra.mxu0 0.0
        %1696 = vmatprep.subr.mxu0 0.0
        %1697 = vmatpush1.msra.mxu0 0.0
        %1698 = vmatprep.subr.mxu0 0.0
        %1699 = vmatpush1.msra.mxu0 0.0
        %1700 = vmatprep.subr.mxu0 0.0
        %1701 = vmatpush1.msra.mxu0 0.0
        %1702 = vmatprep.subr.mxu0 0.0
        %1703 = vmatpush1.msra.mxu0 0.0
        %1704 = vmatprep.subr.mxu0 0.0
        %1705 = vmatpush1.msra.mxu0 0.0
        %1706 = vmatprep.subr.mxu0 0.0
        %1707 = vmatpush1.msra.mxu0 0.0
        %1708 = vmatprep.subr.mxu0 0.0
        %1709 = vmatpush1.msra.mxu0 0.0
        %1710 = vmatprep.subr.mxu0 0.0
        %1711 = vmatpush1.msra.mxu0 0.0
        %1712 = vmatprep.subr.mxu0 0.0
        %1713 = vmatpush1.msra.mxu0 0.0
        %1714 = vmatprep.subr.mxu0 0.0
        %1715 = vmatpush1.msra.mxu0 0.0
        %1716 = vmatprep.subr.mxu0 0.0
        %1717 = vmatpush1.msra.mxu0 0.0
        %1718 = vmatprep.subr.mxu0 0.0
        %1719 = vmatpush1.msra.mxu0 0.0
        %1720 = vmatprep.subr.mxu0 0.0
        %1721 = vmatpush1.msra.mxu0 0.0
        %1722 = vmatprep.subr.mxu0 %v1690
        %1723 = vmatpush1.msra.mxu0 %v1687
        %1724 = vmatprep.subr.mxu0 0.0
        %1725 = vmatpush2.msra.mxu0 0.0
        %1726 = vmatprep.subr.mxu0 0.0
        %1727 = vmatpush2.msra.mxu0 0.0
        %1728 = vmatprep.subr.mxu0 0.0
        %1729 = vmatpush2.msra.mxu0 0.0
        %1730 = vmatprep.subr.mxu0 0.0
        %1731 = vmatpush2.msra.mxu0 0.0
        %1732 = vmatprep.subr.mxu0 0.0
        %1733 = vmatpush2.msra.mxu0 0.0
        %1734 = vmatprep.subr.mxu0 0.0
        %1735 = vmatpush2.msra.mxu0 0.0
        %1736 = vmatprep.subr.mxu0 0.0
        %1737 = vmatpush2.msra.mxu0 0.0
        %1738 = vmatprep.subr.mxu0 0.0
        %1739 = vmatpush2.msra.mxu0 0.0
        %1740 = vmatprep.subr.mxu0 0.0
        %1741 = vmatpush2.msra.mxu0 0.0
        %1742 = vmatprep.subr.mxu0 0.0
        %1743 = vmatpush2.msra.mxu0 0.0
        %1744 = vmatprep.subr.mxu0 0.0
        %1745 = vmatpush2.msra.mxu0 0.0
        %1746 = vmatprep.subr.mxu0 0.0
        %1747 = vmatpush2.msra.mxu0 0.0
        %1748 = vmatprep.subr.mxu0 0.0
        %1749 = vmatpush2.msra.mxu0 0.0
        %1750 = vmatprep.subr.mxu0 0.0
        %1751 = vmatpush2.msra.mxu0 0.0
        %1752 = vmatprep.subr.mxu0 0.0
        %1753 = vmatpush2.msra.mxu0 0.0
        %1754 = vmatprep.subr.mxu0 0.0
        %1755 = vmatpush2.msra.mxu0 0.0
        %1756 = vmatprep.mubr.f32.mxu0 0.0
        %1757 = vmatmul.mubr.f32.gmra.mxu0 %v1684
        %v1758 = vpop.f32.mrf.mxu0
        %v1759 = vadd.f32 0.0, %v1758
        %v1760 = vpop.f32.mrf.mxu0
        %v1761 = vadd.f32 0.0, %v1760
        %1762 = vdwg.mxu0
        %v1763 = vadd.f32 %v1662, %v1759
        %v1764 = vadd.f32 %v1663, %v1761
        %v1765 = vld [vmem:[#allocation2 + $0x4] sm:$0xff]
        %v1766 = vld [vmem:[#allocation2 + $0xc] sm:$0xf]
        %s1767 = scalar_lea.vmem %s2, 28
        %v1768 = vld [vmem:[%s1767] sm:$0xf]
        %v1771 = vcombine.high %v1765, %v1765
        %1772 = vrot.lane.b32.xlu0 %v1765, 112
        %v1773 = vpop.permute.xlu0 %1772
        %1774 = vrot.lane.b32.xlu0 %v1771, 112
        %v1775 = vpop.permute.xlu0 %1774
        %1776 = vrot.lane.b32.xlu0 %v1766, 112
        %v1777 = vpop.permute.xlu0 %1776
        %v1778 = vsel %vm878, %v1773, %v1775
        %v1779 = vsel %vm878, %v1775, %v1777
        %v1781 = vsel %vm212, %v1768, 0
        %v1783 = vsel %vm216, %v1778, 0
        %v1785 = vsel %vm216, %v1779, 0
        %1787 = vmatprep.subr.mxu0 0.0
        %1788 = vmatpush1.msra.mxu0 0.0
        %1789 = vmatprep.subr.mxu0 0.0
        %1790 = vmatpush1.msra.mxu0 0.0
        %1791 = vmatprep.subr.mxu0 0.0
        %1792 = vmatpush1.msra.mxu0 0.0
        %1793 = vmatprep.subr.mxu0 0.0
        %1794 = vmatpush1.msra.mxu0 0.0
        %1795 = vmatprep.subr.mxu0 0.0
        %1796 = vmatpush1.msra.mxu0 0.0
        %1797 = vmatprep.subr.mxu0 0.0
        %1798 = vmatpush1.msra.mxu0 0.0
        %1799 = vmatprep.subr.mxu0 0.0
        %1800 = vmatpush1.msra.mxu0 0.0
        %1801 = vmatprep.subr.mxu0 0.0
        %1802 = vmatpush1.msra.mxu0 0.0
        %1803 = vmatprep.subr.mxu0 0.0
        %1804 = vmatpush1.msra.mxu0 0.0
        %1805 = vmatprep.subr.mxu0 0.0
        %1806 = vmatpush1.msra.mxu0 0.0
        %1807 = vmatprep.subr.mxu0 0.0
        %1808 = vmatpush1.msra.mxu0 0.0
        %1809 = vmatprep.subr.mxu0 0.0
        %1810 = vmatpush1.msra.mxu0 0.0
        %1811 = vmatprep.subr.mxu0 0.0
        %1812 = vmatpush1.msra.mxu0 0.0
        %1813 = vmatprep.subr.mxu0 0.0
        %1814 = vmatpush1.msra.mxu0 0.0
        %1815 = vmatprep.subr.mxu0 0.0
        %1816 = vmatpush1.msra.mxu0 0.0
        %1817 = vmatprep.subr.mxu0 %v1785
        %1818 = vmatpush1.msra.mxu0 %v1783
        %1819 = vmatprep.subr.mxu0 0.0
        %1820 = vmatpush2.msra.mxu0 0.0
        %1821 = vmatprep.subr.mxu0 0.0
        %1822 = vmatpush2.msra.mxu0 0.0
        %1823 = vmatprep.subr.mxu0 0.0
        %1824 = vmatpush2.msra.mxu0 0.0
        %1825 = vmatprep.subr.mxu0 0.0
        %1826 = vmatpush2.msra.mxu0 0.0
        %1827 = vmatprep.subr.mxu0 0.0
        %1828 = vmatpush2.msra.mxu0 0.0
        %1829 = vmatprep.subr.mxu0 0.0
        %1830 = vmatpush2.msra.mxu0 0.0
        %1831 = vmatprep.subr.mxu0 0.0
        %1832 = vmatpush2.msra.mxu0 0.0
        %1833 = vmatprep.subr.mxu0 0.0
        %1834 = vmatpush2.msra.mxu0 0.0
        %1835 = vmatprep.subr.mxu0 0.0
        %1836 = vmatpush2.msra.mxu0 0.0
        %1837 = vmatprep.subr.mxu0 0.0
        %1838 = vmatpush2.msra.mxu0 0.0
        %1839 = vmatprep.subr.mxu0 0.0
        %1840 = vmatpush2.msra.mxu0 0.0
        %1841 = vmatprep.subr.mxu0 0.0
        %1842 = vmatpush2.msra.mxu0 0.0
        %1843 = vmatprep.subr.mxu0 0.0
        %1844 = vmatpush2.msra.mxu0 0.0
        %1845 = vmatprep.subr.mxu0 0.0
        %1846 = vmatpush2.msra.mxu0 0.0
        %1847 = vmatprep.subr.mxu0 0.0
        %1848 = vmatpush2.msra.mxu0 0.0
        %1849 = vmatprep.subr.mxu0 0.0
        %1850 = vmatpush2.msra.mxu0 0.0
        %1851 = vmatprep.mubr.f32.mxu0 0.0
        %1852 = vmatmul.mubr.f32.gmra.mxu0 %v1781
        %v1853 = vpop.f32.mrf.mxu0
        %v1854 = vadd.f32 0.0, %v1853
        %v1855 = vpop.f32.mrf.mxu0
        %v1856 = vadd.f32 0.0, %v1855
        %1857 = vdwg.mxu0
        %v1858 = vadd.f32 %v1763, %v1854
        %v1859 = vadd.f32 %v1764, %v1856
        %v1860 = vld [vmem:[#allocation2 + $0x4] sm:$0xff]
        %v1861 = vld [vmem:[#allocation2 + $0xc] sm:$0xf]
        %v1864 = vcombine.high %v1860, %v1860
        %1865 = vrot.lane.b32.xlu0 %v1860, 111
        %v1866 = vpop.permute.xlu0 %1865
        %1867 = vrot.lane.b32.xlu0 %v1864, 111
        %v1868 = vpop.permute.xlu0 %1867
        %1869 = vrot.lane.b32.xlu0 %v1861, 111
        %v1870 = vpop.permute.xlu0 %1869
        %v1871 = vsel %vm972, %v1866, %v1868
        %v1872 = vsel %vm972, %v1868, %v1870
        %v1875 = vsel %vm176, %v1871, 0.0
        %v1876 = vsel %vm177, %v1872, 0.0
        %s1877 = scalar_lea.vmem %s2, 32
        %v1878 = vld [vmem:[%s1877] sm:$0xf]
        %v1880 = vsel %vm212, %v1878, 0
        %v1883 = vsel %vm216, %v1875, 0
        %v1886 = vsel %vm216, %v1876, 0
        %1888 = vmatprep.subr.mxu0 0.0
        %1889 = vmatpush1.msra.mxu0 0.0
        %1890 = vmatprep.subr.mxu0 0.0
        %1891 = vmatpush1.msra.mxu0 0.0
        %1892 = vmatprep.subr.mxu0 0.0
        %1893 = vmatpush1.msra.mxu0 0.0
        %1894 = vmatprep.subr.mxu0 0.0
        %1895 = vmatpush1.msra.mxu0 0.0
        %1896 = vmatprep.subr.mxu0 0.0
        %1897 = vmatpush1.msra.mxu0 0.0
        %1898 = vmatprep.subr.mxu0 0.0
        %1899 = vmatpush1.msra.mxu0 0.0
        %1900 = vmatprep.subr.mxu0 0.0
        %1901 = vmatpush1.msra.mxu0 0.0
        %1902 = vmatprep.subr.mxu0 0.0
        %1903 = vmatpush1.msra.mxu0 0.0
        %1904 = vmatprep.subr.mxu0 0.0
        %1905 = vmatpush1.msra.mxu0 0.0
        %1906 = vmatprep.subr.mxu0 0.0
        %1907 = vmatpush1.msra.mxu0 0.0
        %1908 = vmatprep.subr.mxu0 0.0
        %1909 = vmatpush1.msra.mxu0 0.0
        %1910 = vmatprep.subr.mxu0 0.0
        %1911 = vmatpush1.msra.mxu0 0.0
        %1912 = vmatprep.subr.mxu0 0.0
        %1913 = vmatpush1.msra.mxu0 0.0
        %1914 = vmatprep.subr.mxu0 0.0
        %1915 = vmatpush1.msra.mxu0 0.0
        %1916 = vmatprep.subr.mxu0 0.0
        %1917 = vmatpush1.msra.mxu0 0.0
        %1918 = vmatprep.subr.mxu0 %v1886
        %1919 = vmatpush1.msra.mxu0 %v1883
        %1920 = vmatprep.subr.mxu0 0.0
        %1921 = vmatpush2.msra.mxu0 0.0
        %1922 = vmatprep.subr.mxu0 0.0
        %1923 = vmatpush2.msra.mxu0 0.0
        %1924 = vmatprep.subr.mxu0 0.0
        %1925 = vmatpush2.msra.mxu0 0.0
        %1926 = vmatprep.subr.mxu0 0.0
        %1927 = vmatpush2.msra.mxu0 0.0
        %1928 = vmatprep.subr.mxu0 0.0
        %1929 = vmatpush2.msra.mxu0 0.0
        %1930 = vmatprep.subr.mxu0 0.0
        %1931 = vmatpush2.msra.mxu0 0.0
        %1932 = vmatprep.subr.mxu0 0.0
        %1933 = vmatpush2.msra.mxu0 0.0
        %1934 = vmatprep.subr.mxu0 0.0
        %1935 = vmatpush2.msra.mxu0 0.0
        %1936 = vmatprep.subr.mxu0 0.0
        %1937 = vmatpush2.msra.mxu0 0.0
        %1938 = vmatprep.subr.mxu0 0.0
        %1939 = vmatpush2.msra.mxu0 0.0
        %1940 = vmatprep.subr.mxu0 0.0
        %1941 = vmatpush2.msra.mxu0 0.0
        %1942 = vmatprep.subr.mxu0 0.0
        %1943 = vmatpush2.msra.mxu0 0.0
        %1944 = vmatprep.subr.mxu0 0.0
        %1945 = vmatpush2.msra.mxu0 0.0
        %1946 = vmatprep.subr.mxu0 0.0
        %1947 = vmatpush2.msra.mxu0 0.0
        %1948 = vmatprep.subr.mxu0 0.0
        %1949 = vmatpush2.msra.mxu0 0.0
        %1950 = vmatprep.subr.mxu0 0.0
        %1951 = vmatpush2.msra.mxu0 0.0
        %1952 = vmatprep.mubr.f32.mxu0 0.0
        %1953 = vmatmul.mubr.f32.gmra.mxu0 %v1880
        %v1954 = vpop.f32.mrf.mxu0
        %v1955 = vadd.f32 0.0, %v1954
        %v1956 = vpop.f32.mrf.mxu0
        %v1957 = vadd.f32 0.0, %v1956
        %1958 = vdwg.mxu0
        %v1959 = vadd.f32 %v1858, %v1955
        %v1960 = vadd.f32 %v1859, %v1957
        %v1961 = vsel %vm216, %v1959, 0.0
        %v1962 = vsel %vm216, %v1960, 0.0
        %v1963 = vadd.f32 %v1961, %v1962
        %1964 = vadd.xlane.f32.xlu0 %v1963
        %v1965 = vpop.xlane.xlu0 %1964
        %v1966 = vmul.f32 %v1965, 0.00390625
        %v1967 = vsub.f32 %v1959, %v1966
        %v1968 = vsub.f32 %v1960, %v1966
        %v1969 = vmul.f32 %v1967, %v1967
        %v1970 = vmul.f32 %v1968, %v1968
        %v1971 = vsel %vm216, %v1969, 0.0
        %v1972 = vsel %vm216, %v1970, 0.0
        %v1973 = vadd.f32 %v1971, %v1972
        %1974 = vadd.xlane.f32.xlu0 %v1973
        %v1975 = vpop.xlane.xlu0 %1974
        %v1976 = vmul.f32 %v1975, 0.00390625
        %v1977 = vadd.f32 %v1976, 1e-05
        %v1978 = vrsqrt.pop %v1977
        %v1979 = vmul.f32 %v1967, %v1978
        %v1980 = vmul.f32 %v1968, %v1978
        %v1982 = vcombine.high %v180, %v180
        %v1984 = vadd.f32 %v1979, %v180
        %v1985 = vadd.f32 %v1980, %v1982
        %v1988 = vcombine.low %v1984, %v1985
        %1990 = vst [vmem:[%s163] sm:$0xff] %v1988
        %s1991 = sand.u32 %s93, 1
        %s1992 = scalar_lea.sflag [#allocation4], %s1991
        %s1993 = sand.u32 %s93, 1
        %s1994 = smul.addr %s1993, 8
        %s1995 = scalar_lea.vmem [#allocation3], %s1994
        // Predicated region
        $region33: #{tpu_custom_call.1} parent=31 // pred_check
          %p1996 = pneg %p103
        $region34: #{tpu_custom_call.1} parent=31 // pred_check_branch
          %1998 = sbr.rel (%p1996) target = $region36
        $region35: #{tpu_custom_call.1} parent=31 // pred_region
          %s2000 = ssub.s32 128, 128
          %2001 = vsyncadd %s1992, %s2000
          %s2002 = smul.addr %s17, 2
          %s2003 = smul.addr %s2002, 64
          %s2004 = scalar_lea.hbm %s3, %s2003
          %s2006 = sshll.u32 %s1995, 4
          %s2007 = int_to_ptr.vmem [resolvable:$true] %s2006
          %2009 = dma.vmem_to_hbm [thread:$0]  %s2007, 128, %s2004, %s1992
        $region36: #{tpu_custom_call.1} parent=31 // pred_fallthru
          _
      $region32: #{tpu_custom_call.1} parent=5 // pred_fallthru
        _
      %p2010 = scmp.le.s32.totalorder 2, %s12
      // Predicated region
      $region37: #{tpu_custom_call.1} parent=5 // pred_check
        %p2011 = pneg %p2010
      $region38: #{tpu_custom_call.1} parent=5 // pred_check_branch
        %2013 = sbr.rel (%p2011) target = $region40
      $region39: #{tpu_custom_call.1} parent=5 // pred_region
        %s2014 = ssub.s32 %s12, 2
        // Predicated region
        $region41: #{tpu_custom_call.1} parent=39 // pred_check
          %p2015 = pneg %p109
        $region42: #{tpu_custom_call.1} parent=39 // pred_check_branch
          %2017 = sbr.rel (%p2015) target = $region44
        $region43: #{tpu_custom_call.1} parent=39 // pred_region
          %s2018 = sand.u32 %s94, 1
          %s2019 = scalar_lea.sflag [#allocation4], %s2018
          %s2020 = sand.u32 %s94, 1
          %s2021 = smul.addr %s2020, 8
          %s2022 = scalar_lea.vmem [#allocation3], %s2021
          %2023 = dma.done %s2019, 128
        $region44: #{tpu_custom_call.1} parent=39 // pred_fallthru
          _
      $region40: #{tpu_custom_call.1} parent=5 // pred_fallthru
        _
    $region6: #{tpu_custom_call.1} parent=1 // loop_footer
      %s16 = sadd.s32 1, %s12
    $region7: #{tpu_custom_call.1} parent=1 // loop_footer_branch
      %11 = sbr.rel target = $region3
    $region8: #{tpu_custom_call.1} parent=1 // loop_exit
      _
    %2024 = vsyncpa [#allocation4], 1
    %s2025 = scalar_lea.sflag [#allocation4], 1
    %2026 = vsyncpa %s2025, 1

</llo_original>
